<compile_context>
chip_gen: v7x
topology: tpu7x:2x2x1
jax: 0.10.0
libtpu: 0.0.40
codegen_flags: <defaults>
</compile_context>

<pallas_src>
import jax
import jax.numpy as jnp
from jax.experimental import pallas as pl
from jax.experimental.pallas import tpu as pltpu


def _bottleneck_kernel(x_ref, xt_ref, xb_ref,
                       w1_ref, w2_ref, w3_ref,
                       b1_ref, b2_ref, b3_ref,
                       o_ref):
    # x_ref : (1, TH*W, Cin) bf16  main row-strip (flattened spatial)
    # xt_ref: (1, W,  Cin)   bf16  image row just above the strip (clamped)
    # xb_ref: (1, W,  Cin)   bf16  image row just below the strip (clamped)
    # w1_ref: (Cin, P)  bf16   conv1 1x1, bn1 scale folded in
    # w2_ref: (9P, P)   bf16   conv2 3x3 taps, rows ordered (ky, kx, cin)
    # w3_ref: (P, 4P)   bf16   conv3 1x1, bn3 scale folded in
    # b*_ref: (1, C)    f32    folded BN biases
    # o_ref : (1, TH*W, 4P) bf16
    thw = x_ref.shape[1]
    width = xt_ref.shape[1]
    ext = thw + 2 * width                  # strip + one halo row above / below
    p = w1_ref.shape[1]

    r = pl.program_id(1)
    num_r = pl.num_programs(1)

    # ---- conv1 (1x1) + bn1 + relu on strip and halo rows separately --------
    def conv1(piece):                      # (rows, Cin) bf16 -> (rows, P) f32
        y = jnp.dot(piece, w1_ref[...], preferred_element_type=jnp.float32)
        return jnp.maximum(y + b1_ref[0], 0.0)

    mid1 = conv1(x_ref[0])                                       # (thw, P)
    # Halo rows outside the image are conv2's zero padding: scalar 0/1 gate.
    top1 = conv1(xt_ref[0]) * jnp.where(r > 0, 1.0, 0.0)          # (W, P)
    bot1 = conv1(xb_ref[0]) * jnp.where(r + 1 < num_r, 1.0, 0.0)  # (W, P)

    # Extended conv1 activation (only P channels wide -> cheap sublane concat).
    out1 = jnp.concatenate([top1, mid1, bot1], axis=0)            # (ext, P) f32

    # ---- conv2 (3x3, stride 1, pad 1) + bn2 + relu --------------------------
    # Horizontal taps via XLU rolls + left/right boundary masks (VPU selects).
    col = jax.lax.broadcasted_iota(jnp.int32, (ext, 1), 0) % width
    left = jnp.where(col > 0, pltpu.roll(out1, shift=1, axis=0), 0.0)
    right = jnp.where(col < width - 1,
                      pltpu.roll(out1, shift=ext - 1, axis=0), 0.0)  # roll by -1

    # Single lane-concat of the 3 shift buffers (lanes ordered kx, cin),
    # cast to bf16 once each.
    buf = jnp.concatenate([left.astype(jnp.bfloat16),
                           out1.astype(jnp.bfloat16),
                           right.astype(jnp.bfloat16)], axis=1)    # (ext, 3P)

    # Vertical taps = aligned sublane slices; 3 accumulating matmuls of K = 3P.
    acc = jnp.zeros((thw, p), jnp.float32)
    for ky in range(3):
        acc = acc + jnp.dot(buf[ky * width:ky * width + thw, :],
                            w2_ref[ky * 3 * p:(ky + 1) * 3 * p, :],
                            preferred_element_type=jnp.float32)
    out2 = jnp.maximum(acc + b2_ref[0], 0.0)                       # (thw, P)

    # ---- conv3 (1x1) + bn3 + residual add + relu ----------------------------
    out3 = jnp.dot(out2.astype(jnp.bfloat16), w3_ref[...],
                   preferred_element_type=jnp.float32)
    out3 = out3 + b3_ref[0] + x_ref[0].astype(jnp.float32)
    o_ref[0] = jnp.maximum(out3, 0.0).astype(o_ref.dtype)


def _pick_tile_rows(h, w, n):
    """Divisor of h: strip <= 2048 px, preferring >= ~8 total grid steps."""
    divisors = [d for d in range(1, h + 1) if h % d == 0]
    fitting = [d for d in divisors if d * w <= 2048] or [1]
    want_strips = max(2, -(-8 // max(n, 1)))     # ceil(8 / n), at least 2
    good = [d for d in fitting if h // d >= want_strips]
    multi = [d for d in fitting if h // d >= 2]
    return max(good or multi or fitting)


def bottleneck_forward(x_nchw, params, *, tile_rows=None):
    """x_nchw: (N, Cin, H, W) float32, Cin == 4*planes (stride=1, downsample=None)."""
    w1f, w2f, w3f, b1, b2, b3 = params
    n, c, h, w = x_nchw.shape
    p = w1f.shape[1]
    assert c == 4 * p, "identity residual requires inplanes == planes * 4"
    assert w % 8 == 0, "width must be a multiple of 8 for aligned row blocks"
    th = tile_rows if tile_rows is not None else _pick_tile_rows(h, w, n)
    assert h % th == 0
    nrows = h // th
    thw = th * w

    # NCHW -> flattened NHWC, bf16 halves HBM<->VMEM DMA and feeds the MXU.
    x = jnp.transpose(x_nchw, (0, 2, 3, 1)).reshape(n, h * w, c).astype(jnp.bfloat16)

    def strip_map(b, r):
        return (b, r, 0)

    def top_map(b, r):               # image row just above the strip, clamped
        return (b, jnp.maximum(r * th - 1, 0), 0)

    def bot_map(b, r):               # image row just below the strip, clamped
        return (b, jnp.minimum((r + 1) * th, h - 1), 0)

    def rep(arr):                    # small operand, same full block every step
        return pl.BlockSpec(arr.shape, lambda b, r, _nd=arr.ndim: (0,) * _nd)

    weight_bytes = (w1f.size + w2f.size + w3f.size) * 2 + (b1.size + b2.size + b3.size) * 4
    flops = 2 * n * h * w * (c * p + 9 * p * p + p * 4 * p)
    bytes_accessed = int(n * h * w * (c * 2 * (1.0 + 2.0 / th) + 4 * p * 2)
                         + weight_bytes)

    out = pl.pallas_call(
        _bottleneck_kernel,
        out_shape=jax.ShapeDtypeStruct((n, h * w, 4 * p), jnp.bfloat16),
        grid_spec=pltpu.PrefetchScalarGridSpec(
            num_scalar_prefetch=0,
            grid=(n, nrows),
            in_specs=[
                pl.BlockSpec((1, thw, c), strip_map),
                pl.BlockSpec((1, w, c), top_map),
                pl.BlockSpec((1, w, c), bot_map),
                rep(w1f), rep(w2f), rep(w3f),
                rep(b1), rep(b2), rep(b3),
            ],
            out_specs=pl.BlockSpec((1, thw, 4 * p), strip_map),
        ),
        compiler_params=pltpu.CompilerParams(
            dimension_semantics=("parallel", "parallel"),
            vmem_limit_bytes=48 * 1024 * 1024,     # fits v7x's 64 MiB physical VMEM
        ),
        cost_estimate=pl.CostEstimate(flops=flops, transcendentals=0,
                                      bytes_accessed=bytes_accessed),
    )(x, x, x, w1f, w2f, w3f, b1, b2, b3)

    out = out.reshape(n, h, w, 4 * p).astype(jnp.float32)
    return jnp.transpose(out, (0, 3, 1, 2))                  # back to NCHW f32


def init_params(key, inplanes, planes, eps=1e-5):
    """Synthetic weights matching Bottleneck.__init__; returns kernel + torch forms."""
    keys = jax.random.split(key, 6)
    # PyTorch conv layouts: (Cout, Cin, kH, kW)
    w1_t = jax.random.normal(keys[0], (planes, inplanes, 1, 1), jnp.float32) * 0.1
    w2_t = jax.random.normal(keys[1], (planes, planes, 3, 3), jnp.float32) * 0.1
    w3_t = jax.random.normal(keys[2], (planes * 4, planes, 1, 1), jnp.float32) * 0.1

    def make_bn(k, cc):
        k1, k2, k3, k4 = jax.random.split(k, 4)
        gamma = jax.random.uniform(k1, (cc,), jnp.float32, 0.5, 1.5)
        beta = jax.random.normal(k2, (cc,), jnp.float32) * 0.1
        mean = jax.random.normal(k3, (cc,), jnp.float32) * 0.1
        var = jax.random.uniform(k4, (cc,), jnp.float32, 0.5, 1.5)
        scale = gamma / jnp.sqrt(var + eps)
        bias = beta - mean * scale
        return scale, bias

    s1, b1 = make_bn(keys[3], planes)
    s2, b2 = make_bn(keys[4], planes)
    s3, b3 = make_bn(keys[5], planes * 4)

    # Fold BN scales into the conv weights; cast to bf16 for the MXU.
    w1f = (jnp.transpose(w1_t[:, :, 0, 0], (1, 0)) * s1[None, :]).astype(jnp.bfloat16)
    w2f = (jnp.transpose(w2_t, (2, 3, 1, 0)) * s2[None, None, None, :])
    w2f = w2f.reshape(9 * planes, planes).astype(jnp.bfloat16)   # rows = (ky, kx, cin)
    w3f = (jnp.transpose(w3_t[:, :, 0, 0], (1, 0)) * s3[None, :]).astype(jnp.bfloat16)

    kernel_params = (w1f, w2f, w3f,
                     b1.reshape(1, -1), b2.reshape(1, -1), b3.reshape(1, -1))
    torch_params = (w1_t, w2_t, w3_t, s1, b1, s2, b2, s3, b3)
    return kernel_params, torch_params


def reference_forward(x, torch_params):
    """Pure-JAX reference matching the PyTorch forward (eval-mode BN, f32)."""
    w1_t, w2_t, w3_t, s1, b1, s2, b2, s3, b3 = torch_params

    def conv(inp, w, pad):
        return jax.lax.conv_general_dilated(
            inp, w, (1, 1), ((pad, pad), (pad, pad)),
            dimension_numbers=("NCHW", "OIHW", "NCHW"),
            precision=jax.lax.Precision.HIGHEST)

    def bn(y, s, b):
        return y * s.reshape(1, -1, 1, 1) + b.reshape(1, -1, 1, 1)

    out = jnp.maximum(bn(conv(x, w1_t, 0), s1, b1), 0.0)
    out = jnp.maximum(bn(conv(out, w2_t, 1), s2, b2), 0.0)
    out = bn(conv(out, w3_t, 0), s3, b3)
    return jnp.maximum(out + x, 0.0)


if __name__ == "__main__":
    planes = 32
    inplanes = planes * 4          # downsample=None => residual requires this
    N, H, W = 2, 16, 16            # 4*planes = 128 lanes -> unmasked stores

    key = jax.random.PRNGKey(0)
    kx, kp = jax.random.split(key)
    x = jax.random.normal(kx, (N, inplanes, H, W), jnp.float32)

    kernel_params, torch_params = init_params(kp, inplanes, planes)

    out = bottleneck_forward(x, kernel_params)
    out = jax.block_until_ready(out)

    ref = reference_forward(x, torch_params)
    assert out.shape == (N, inplanes, H, W)
    max_err = jnp.max(jnp.abs(out - ref))
    # bf16 activations/weights (incl. the residual) vs f32 reference ->
    # bf16-level tolerance; intentional precision trade-off.
    assert jnp.allclose(out, ref, rtol=2e-2, atol=1e-1), \
        f"mismatch vs reference (max abs err {max_err})"

    print("KERNEL_OK")
</pallas_src>

<mosaic_0001>
module attributes {stable_mosaic.version = 11 : i64} {
  func.func @_bottleneck_kernel(%arg0: i32, %arg1: i32, %arg2: memref<1x64x128xbf16, #tpu.memory_space<vmem>>, %arg3: memref<1x16x128xbf16, #tpu.memory_space<vmem>>, %arg4: memref<1x16x128xbf16, #tpu.memory_space<vmem>>, %arg5: memref<128x32xbf16, #tpu.memory_space<vmem>>, %arg6: memref<288x32xbf16, #tpu.memory_space<vmem>>, %arg7: memref<32x128xbf16, #tpu.memory_space<vmem>>, %arg8: memref<1x32xf32, #tpu.memory_space<vmem>>, %arg9: memref<1x32xf32, #tpu.memory_space<vmem>>, %arg10: memref<1x128xf32, #tpu.memory_space<vmem>>, %arg11: memref<1x64x128xbf16, #tpu.memory_space<vmem>>) attributes {dimension_semantics = [#tpu.dimension_semantics<parallel>, #tpu.dimension_semantics<parallel>], iteration_bounds = array<i64: 2, 4>, scalar_prefetch = 0 : i64, scratch_operands = 0 : i64, tpu.core_type = #tpu.core_type<tc>, window_params = [{transform_indices = @transform_0, window_bounds = array<i64: 1, 64, 128>}, {transform_indices = @transform_1, window_bounds = array<i64: 1, 16, 128>}, {transform_indices = @transform_2, window_bounds = array<i64: 1, 16, 128>}, {pipeline_mode = #tpu.pipeline_mode<synchronous>, transform_indices = @transform_3, window_bounds = array<i64: 128, 32>}, {pipeline_mode = #tpu.pipeline_mode<synchronous>, transform_indices = @transform_4, window_bounds = array<i64: 288, 32>}, {pipeline_mode = #tpu.pipeline_mode<synchronous>, transform_indices = @transform_5, window_bounds = array<i64: 32, 128>}, {pipeline_mode = #tpu.pipeline_mode<synchronous>, transform_indices = @transform_6, window_bounds = array<i64: 1, 32>}, {pipeline_mode = #tpu.pipeline_mode<synchronous>, transform_indices = @transform_7, window_bounds = array<i64: 1, 32>}, {pipeline_mode = #tpu.pipeline_mode<synchronous>, transform_indices = @transform_8, window_bounds = array<i64: 1, 128>}, {transform_indices = @transform_9, window_bounds = array<i64: 1, 64, 128>}]} {
    %c0 = arith.constant 0 : index
    %c0_0 = arith.constant 0 : index
    %c0_1 = arith.constant 0 : index
    %0 = vector.load %arg2[%c0, %c0_0, %c0_1] : memref<1x64x128xbf16, #tpu.memory_space<vmem>>, vector<1x64x128xbf16>
    %1 = vector.shape_cast %0 : vector<1x64x128xbf16> to vector<64x128xbf16>
    %c0_2 = arith.constant 0 : index
    %c0_3 = arith.constant 0 : index
    %2 = vector.load %arg5[%c0_2, %c0_3] : memref<128x32xbf16, #tpu.memory_space<vmem>>, vector<128x32xbf16>
    %cst = arith.constant dense<0.000000e+00> : vector<64x32xf32>
    %3 = tpu.matmul %1, %2, %cst {dimension_numbers = #tpu.dot_dimension_numbers<[1], [0], [0], [1], [0, 0, 1, 1], [], []>} : vector<64x128xbf16>, vector<128x32xbf16>, vector<64x32xf32> -> vector<64x32xf32>
    %c0_4 = arith.constant 0 : index
    %c0_5 = arith.constant 0 : index
    %4 = vector.load %arg8[%c0_4, %c0_5] : memref<1x32xf32, #tpu.memory_space<vmem>>, vector<1x32xf32>
    %5 = vector.shape_cast %4 : vector<1x32xf32> to vector<32xf32>
    %6 = vector.shape_cast %5 : vector<32xf32> to vector<1x32xf32>
    %7 = vector.broadcast %6 : vector<1x32xf32> to vector<64x32xf32>
    %8 = arith.addf %3, %7 : vector<64x32xf32>
    %cst_6 = arith.constant 0.000000e+00 : f32
    %9 = vector.broadcast %cst_6 : f32 to vector<64x32xf32>
    %10 = arith.maximumf %8, %9 : vector<64x32xf32>
    %c0_7 = arith.constant 0 : index
    %c0_8 = arith.constant 0 : index
    %c0_9 = arith.constant 0 : index
    %11 = vector.load %arg3[%c0_7, %c0_8, %c0_9] : memref<1x16x128xbf16, #tpu.memory_space<vmem>>, vector<1x16x128xbf16>
    %12 = vector.shape_cast %11 : vector<1x16x128xbf16> to vector<16x128xbf16>
    %c0_10 = arith.constant 0 : index
    %c0_11 = arith.constant 0 : index
    %13 = vector.load %arg5[%c0_10, %c0_11] : memref<128x32xbf16, #tpu.memory_space<vmem>>, vector<128x32xbf16>
    %cst_12 = arith.constant dense<0.000000e+00> : vector<16x32xf32>
    %14 = tpu.matmul %12, %13, %cst_12 {dimension_numbers = #tpu.dot_dimension_numbers<[1], [0], [0], [1], [0, 0, 1, 1], [], []>} : vector<16x128xbf16>, vector<128x32xbf16>, vector<16x32xf32> -> vector<16x32xf32>
    %c0_13 = arith.constant 0 : index
    %c0_14 = arith.constant 0 : index
    %15 = vector.load %arg8[%c0_13, %c0_14] : memref<1x32xf32, #tpu.memory_space<vmem>>, vector<1x32xf32>
    %16 = vector.shape_cast %15 : vector<1x32xf32> to vector<32xf32>
    %17 = vector.shape_cast %16 : vector<32xf32> to vector<1x32xf32>
    %18 = vector.broadcast %17 : vector<1x32xf32> to vector<16x32xf32>
    %19 = arith.addf %14, %18 : vector<16x32xf32>
    %cst_15 = arith.constant 0.000000e+00 : f32
    %20 = vector.broadcast %cst_15 : f32 to vector<16x32xf32>
    %21 = arith.maximumf %19, %20 : vector<16x32xf32>
    %c0_i32 = arith.constant 0 : i32
    %22 = arith.cmpi sgt, %arg1, %c0_i32 : i32
    %cst_16 = arith.constant 1.000000e+00 : f32
    %cst_17 = arith.constant 0.000000e+00 : f32
    %23 = arith.select %22, %cst_16, %cst_17 : f32
    %24 = vector.broadcast %23 : f32 to vector<16x32xf32>
    %25 = arith.mulf %21, %24 : vector<16x32xf32>
    %c0_18 = arith.constant 0 : index
    %c0_19 = arith.constant 0 : index
    %c0_20 = arith.constant 0 : index
    %26 = vector.load %arg4[%c0_18, %c0_19, %c0_20] : memref<1x16x128xbf16, #tpu.memory_space<vmem>>, vector<1x16x128xbf16>
    %27 = vector.shape_cast %26 : vector<1x16x128xbf16> to vector<16x128xbf16>
    %c0_21 = arith.constant 0 : index
    %c0_22 = arith.constant 0 : index
    %28 = vector.load %arg5[%c0_21, %c0_22] : memref<128x32xbf16, #tpu.memory_space<vmem>>, vector<128x32xbf16>
    %cst_23 = arith.constant dense<0.000000e+00> : vector<16x32xf32>
    %29 = tpu.matmul %27, %28, %cst_23 {dimension_numbers = #tpu.dot_dimension_numbers<[1], [0], [0], [1], [0, 0, 1, 1], [], []>} : vector<16x128xbf16>, vector<128x32xbf16>, vector<16x32xf32> -> vector<16x32xf32>
    %c0_24 = arith.constant 0 : index
    %c0_25 = arith.constant 0 : index
    %30 = vector.load %arg8[%c0_24, %c0_25] : memref<1x32xf32, #tpu.memory_space<vmem>>, vector<1x32xf32>
    %31 = vector.shape_cast %30 : vector<1x32xf32> to vector<32xf32>
    %32 = vector.shape_cast %31 : vector<32xf32> to vector<1x32xf32>
    %33 = vector.broadcast %32 : vector<1x32xf32> to vector<16x32xf32>
    %34 = arith.addf %29, %33 : vector<16x32xf32>
    %cst_26 = arith.constant 0.000000e+00 : f32
    %35 = vector.broadcast %cst_26 : f32 to vector<16x32xf32>
    %36 = arith.maximumf %34, %35 : vector<16x32xf32>
    %c1_i32 = arith.constant 1 : i32
    %37 = arith.addi %arg1, %c1_i32 : i32
    %c4_i32 = arith.constant 4 : i32
    %38 = arith.cmpi slt, %37, %c4_i32 : i32
    %cst_27 = arith.constant 1.000000e+00 : f32
    %cst_28 = arith.constant 0.000000e+00 : f32
    %39 = arith.select %38, %cst_27, %cst_28 : f32
    %40 = vector.broadcast %39 : f32 to vector<16x32xf32>
    %41 = arith.mulf %36, %40 : vector<16x32xf32>
    %42 = tpu.concatenate %25, %10, %41 in 0 : vector<16x32xf32>, vector<64x32xf32>, vector<16x32xf32> -> vector<96x32xf32>
    %43 = tpu.iota {dimensions = array<i32: 0>} : vector<96x1xi32>
    %c16_i32 = arith.constant 16 : i32
    %c0_i32_29 = arith.constant 0 : i32
    %44 = arith.cmpi eq, %c16_i32, %c0_i32_29 : i32
    %c1_i32_30 = arith.constant 1 : i32
    %45 = arith.select %44, %c1_i32_30, %c16_i32 : i32
    %46 = vector.broadcast %45 : i32 to vector<96x1xi32>
    %47 = arith.remsi %43, %46 : vector<96x1xi32>
    %c0_i32_31 = arith.constant 0 : i32
    %48 = vector.broadcast %c0_i32_31 : i32 to vector<96x1xi32>
    %49 = arith.cmpi ne, %47, %48 : vector<96x1xi32>
    %c0_i32_32 = arith.constant 0 : i32
    %50 = vector.broadcast %c0_i32_32 : i32 to vector<96x1xi32>
    %51 = arith.cmpi slt, %47, %50 : vector<96x1xi32>
    %c0_i32_33 = arith.constant 0 : i32
    %52 = arith.cmpi slt, %45, %c0_i32_33 : i32
    %53 = vector.broadcast %52 : i1 to vector<96x1xi1>
    %54 = vector.broadcast %53 : vector<96x1xi1> to vector<96x1xi1>
    %55 = arith.xori %51, %54 : vector<96x1xi1>
    %56 = arith.andi %55, %49 : vector<96x1xi1>
    %57 = vector.broadcast %45 : i32 to vector<96x1xi32>
    %58 = arith.addi %47, %57 : vector<96x1xi32>
    %59 = arith.select %56, %58, %47 : vector<96x1xi1>, vector<96x1xi32>
    %c0_i32_34 = arith.constant 0 : i32
    %60 = vector.broadcast %c0_i32_34 : i32 to vector<96x1xi32>
    %61 = arith.cmpi sgt, %59, %60 : vector<96x1xi32>
    %c1_i32_35 = arith.constant 1 : i32
    %62 = tpu.dynamic_rotate %42 by %c1_i32_35 dim 0 : vector<96x32xf32>, i32 -> vector<96x32xf32>
    %cst_36 = arith.constant 0.000000e+00 : f32
    %63 = vector.shape_cast %61 : vector<96x1xi1> to vector<96x1xi1>
    %64 = vector.broadcast %63 : vector<96x1xi1> to vector<96x32xi1>
    %65 = vector.broadcast %cst_36 : f32 to vector<96x32xf32>
    %66 = arith.select %64, %62, %65 : vector<96x32xi1>, vector<96x32xf32>
    %c15_i32 = arith.constant 15 : i32
    %67 = vector.broadcast %c15_i32 : i32 to vector<96x1xi32>
    %68 = arith.cmpi slt, %59, %67 : vector<96x1xi32>
    %c95_i32 = arith.constant 95 : i32
    %69 = tpu.dynamic_rotate %42 by %c95_i32 dim 0 : vector<96x32xf32>, i32 -> vector<96x32xf32>
    %cst_37 = arith.constant 0.000000e+00 : f32
    %70 = vector.shape_cast %68 : vector<96x1xi1> to vector<96x1xi1>
    %71 = vector.broadcast %70 : vector<96x1xi1> to vector<96x32xi1>
    %72 = vector.broadcast %cst_37 : f32 to vector<96x32xf32>
    %73 = arith.select %71, %69, %72 : vector<96x32xi1>, vector<96x32xf32>
    %74 = arith.truncf %66 : vector<96x32xf32> to vector<96x32xbf16>
    %75 = arith.truncf %42 : vector<96x32xf32> to vector<96x32xbf16>
    %76 = arith.truncf %73 : vector<96x32xf32> to vector<96x32xbf16>
    %77 = tpu.concatenate %74, %75, %76 in 1 : vector<96x32xbf16>, vector<96x32xbf16>, vector<96x32xbf16> -> vector<96x96xbf16>
    %cst_38 = arith.constant 0.000000e+00 : f32
    %78 = vector.broadcast %cst_38 : f32 to vector<64x32xf32>
    %79 = vector.extract_strided_slice %77 {offsets = [0, 0], sizes = [64, 96], strides = [1, 1]} : vector<96x96xbf16> to vector<64x96xbf16>
    %c0_39 = arith.constant 0 : index
    %c0_40 = arith.constant 0 : index
    %80 = vector.load %arg6[%c0_39, %c0_40] : memref<288x32xbf16, #tpu.memory_space<vmem>>, vector<96x32xbf16>
    %cst_41 = arith.constant dense<0.000000e+00> : vector<64x32xf32>
    %81 = tpu.matmul %79, %80, %cst_41 {dimension_numbers = #tpu.dot_dimension_numbers<[1], [0], [0], [1], [0, 0, 1, 1], [], []>} : vector<64x96xbf16>, vector<96x32xbf16>, vector<64x32xf32> -> vector<64x32xf32>
    %82 = arith.addf %78, %81 : vector<64x32xf32>
    %83 = vector.extract_strided_slice %77 {offsets = [16, 0], sizes = [64, 96], strides = [1, 1]} : vector<96x96xbf16> to vector<64x96xbf16>
    %c96 = arith.constant 96 : index
    %c0_42 = arith.constant 0 : index
    %84 = vector.load %arg6[%c96, %c0_42] : memref<288x32xbf16, #tpu.memory_space<vmem>>, vector<96x32xbf16>
    %cst_43 = arith.constant dense<0.000000e+00> : vector<64x32xf32>
    %85 = tpu.matmul %83, %84, %cst_43 {dimension_numbers = #tpu.dot_dimension_numbers<[1], [0], [0], [1], [0, 0, 1, 1], [], []>} : vector<64x96xbf16>, vector<96x32xbf16>, vector<64x32xf32> -> vector<64x32xf32>
    %86 = arith.addf %82, %85 : vector<64x32xf32>
    %87 = vector.extract_strided_slice %77 {offsets = [32, 0], sizes = [64, 96], strides = [1, 1]} : vector<96x96xbf16> to vector<64x96xbf16>
    %c192 = arith.constant 192 : index
    %c0_44 = arith.constant 0 : index
    %88 = vector.load %arg6[%c192, %c0_44] : memref<288x32xbf16, #tpu.memory_space<vmem>>, vector<96x32xbf16>
    %cst_45 = arith.constant dense<0.000000e+00> : vector<64x32xf32>
    %89 = tpu.matmul %87, %88, %cst_45 {dimension_numbers = #tpu.dot_dimension_numbers<[1], [0], [0], [1], [0, 0, 1, 1], [], []>} : vector<64x96xbf16>, vector<96x32xbf16>, vector<64x32xf32> -> vector<64x32xf32>
    %90 = arith.addf %86, %89 : vector<64x32xf32>
    %c0_46 = arith.constant 0 : index
    %c0_47 = arith.constant 0 : index
    %91 = vector.load %arg9[%c0_46, %c0_47] : memref<1x32xf32, #tpu.memory_space<vmem>>, vector<1x32xf32>
    %92 = vector.shape_cast %91 : vector<1x32xf32> to vector<32xf32>
    %93 = vector.shape_cast %92 : vector<32xf32> to vector<1x32xf32>
    %94 = vector.broadcast %93 : vector<1x32xf32> to vector<64x32xf32>
    %95 = arith.addf %90, %94 : vector<64x32xf32>
    %cst_48 = arith.constant 0.000000e+00 : f32
    %96 = vector.broadcast %cst_48 : f32 to vector<64x32xf32>
    %97 = arith.maximumf %95, %96 : vector<64x32xf32>
    %98 = arith.truncf %97 : vector<64x32xf32> to vector<64x32xbf16>
    %c0_49 = arith.constant 0 : index
    %c0_50 = arith.constant 0 : index
    %99 = vector.load %arg7[%c0_49, %c0_50] : memref<32x128xbf16, #tpu.memory_space<vmem>>, vector<32x128xbf16>
    %cst_51 = arith.constant dense<0.000000e+00> : vector<64x128xf32>
    %100 = tpu.matmul %98, %99, %cst_51 {dimension_numbers = #tpu.dot_dimension_numbers<[1], [0], [0], [1], [0, 0, 1, 1], [], []>} : vector<64x32xbf16>, vector<32x128xbf16>, vector<64x128xf32> -> vector<64x128xf32>
    %c0_52 = arith.constant 0 : index
    %c0_53 = arith.constant 0 : index
    %101 = vector.load %arg10[%c0_52, %c0_53] : memref<1x128xf32, #tpu.memory_space<vmem>>, vector<1x128xf32>
    %102 = vector.shape_cast %101 : vector<1x128xf32> to vector<128xf32>
    %103 = vector.shape_cast %102 : vector<128xf32> to vector<1x128xf32>
    %104 = vector.broadcast %103 : vector<1x128xf32> to vector<64x128xf32>
    %105 = arith.addf %100, %104 : vector<64x128xf32>
    %c0_54 = arith.constant 0 : index
    %c0_55 = arith.constant 0 : index
    %c0_56 = arith.constant 0 : index
    %106 = vector.load %arg2[%c0_54, %c0_55, %c0_56] : memref<1x64x128xbf16, #tpu.memory_space<vmem>>, vector<1x64x128xbf16>
    %107 = vector.shape_cast %106 : vector<1x64x128xbf16> to vector<64x128xbf16>
    %108 = arith.extf %107 : vector<64x128xbf16> to vector<64x128xf32>
    %109 = arith.addf %105, %108 : vector<64x128xf32>
    %cst_57 = arith.constant 0.000000e+00 : f32
    %110 = vector.broadcast %cst_57 : f32 to vector<64x128xf32>
    %111 = arith.maximumf %109, %110 : vector<64x128xf32>
    %112 = arith.truncf %111 : vector<64x128xf32> to vector<64x128xbf16>
    %c0_58 = arith.constant 0 : index
    %c0_59 = arith.constant 0 : index
    %c0_60 = arith.constant 0 : index
    %113 = vector.load %arg11[%c0_58, %c0_59, %c0_60] : memref<1x64x128xbf16, #tpu.memory_space<vmem>>, vector<1x64x128xbf16>
    %114 = vector.shape_cast %113 : vector<1x64x128xbf16> to vector<64x128xbf16>
    %115 = vector.shape_cast %112 : vector<64x128xbf16> to vector<1x64x128xbf16>
    tpu.vector_store %arg11[%c0_58, %c0_59, %c0_60], %115 {strides = array<i32>} : memref<1x64x128xbf16, #tpu.memory_space<vmem>>, vector<1x64x128xbf16>,
    return
  }
  func.func @transform_0(%arg0: i32, %arg1: i32) -> (i32, i32, i32) {
    %c0_i32 = arith.constant 0 : i32
    %c0_i32_0 = arith.constant 0 : i32
    return %arg0, %arg1, %c0_i32 : i32, i32, i32
  }
  func.func @transform_1(%arg0: i32, %arg1: i32) -> (i32, i32, i32) {
    %c4_i32 = arith.constant 4 : i32
    %0 = arith.muli %arg1, %c4_i32 : i32
    %c1_i32 = arith.constant 1 : i32
    %1 = arith.subi %0, %c1_i32 : i32
    %c0_i32 = arith.constant 0 : i32
    %2 = arith.maxsi %1, %c0_i32 : i32
    %c0_i32_0 = arith.constant 0 : i32
    %c0_i32_1 = arith.constant 0 : i32
    return %arg0, %2, %c0_i32_0 : i32, i32, i32
  }
  func.func @transform_2(%arg0: i32, %arg1: i32) -> (i32, i32, i32) {
    %c1_i32 = arith.constant 1 : i32
    %0 = arith.addi %arg1, %c1_i32 : i32
    %c4_i32 = arith.constant 4 : i32
    %1 = arith.muli %0, %c4_i32 : i32
    %c15_i32 = arith.constant 15 : i32
    %2 = arith.minsi %1, %c15_i32 : i32
    %c0_i32 = arith.constant 0 : i32
    %c0_i32_0 = arith.constant 0 : i32
    return %arg0, %2, %c0_i32 : i32, i32, i32
  }
  func.func @transform_3(%arg0: i32, %arg1: i32) -> (i32, i32) {
    %c0_i32 = arith.constant 0 : i32
    %c0_i32_0 = arith.constant 0 : i32
    %c0_i32_1 = arith.constant 0 : i32
    return %c0_i32, %c0_i32_0 : i32, i32
  }
  func.func @transform_4(%arg0: i32, %arg1: i32) -> (i32, i32) {
    %c0_i32 = arith.constant 0 : i32
    %c0_i32_0 = arith.constant 0 : i32
    %c0_i32_1 = arith.constant 0 : i32
    return %c0_i32, %c0_i32_0 : i32, i32
  }
  func.func @transform_5(%arg0: i32, %arg1: i32) -> (i32, i32) {
    %c0_i32 = arith.constant 0 : i32
    %c0_i32_0 = arith.constant 0 : i32
    %c0_i32_1 = arith.constant 0 : i32
    return %c0_i32, %c0_i32_0 : i32, i32
  }
  func.func @transform_6(%arg0: i32, %arg1: i32) -> (i32, i32) {
    %c0_i32 = arith.constant 0 : i32
    %c0_i32_0 = arith.constant 0 : i32
    %c0_i32_1 = arith.constant 0 : i32
    return %c0_i32, %c0_i32_0 : i32, i32
  }
  func.func @transform_7(%arg0: i32, %arg1: i32) -> (i32, i32) {
    %c0_i32 = arith.constant 0 : i32
    %c0_i32_0 = arith.constant 0 : i32
    %c0_i32_1 = arith.constant 0 : i32
    return %c0_i32, %c0_i32_0 : i32, i32
  }
  func.func @transform_8(%arg0: i32, %arg1: i32) -> (i32, i32) {
    %c0_i32 = arith.constant 0 : i32
    %c0_i32_0 = arith.constant 0 : i32
    %c0_i32_1 = arith.constant 0 : i32
    return %c0_i32, %c0_i32_0 : i32, i32
  }
  func.func @transform_9(%arg0: i32, %arg1: i32) -> (i32, i32, i32) {
    %c0_i32 = arith.constant 0 : i32
    %c0_i32_0 = arith.constant 0 : i32
    return %arg0, %arg1, %c0_i32 : i32, i32, i32
  }
}

</mosaic_0001>

<llo_original>
// kernel: tpu_custom_call.1
$region0: #{tpu_custom_call.1}
  #allocation0 [shape = 'u32[]', space=smem, size = 0x4, offset = 0x4, fixed_abs, tag = 'smem constant byte address 0x4 - core index']
  #allocation1 [shape = 'u32[144,128]{1,0:T(1,128)}', space=vmem, size = 0x12000, scoped, tag = 'internal scratch']
  %s0 = inlined_call_operand.vmem [shape: bf16[2,256,128], index: 0, kind: input, shape index: {}]
  %s1 = inlined_call_operand.hbm [shape: bf16[2,256,128], index: 1, kind: input, shape index: {}]
  %s2 = inlined_call_operand.hbm [shape: bf16[2,256,128], index: 2, kind: input, shape index: {}]
  %s3 = inlined_call_operand.vmem [shape: bf16[128,32], index: 3, kind: input, shape index: {}]
  %s4 = inlined_call_operand.vmem [shape: bf16[288,32], index: 4, kind: input, shape index: {}]
  %s5 = inlined_call_operand.vmem [shape: bf16[32,128], index: 5, kind: input, shape index: {}]
  %s6 = inlined_call_operand.vmem [shape: f32[1,32], index: 6, kind: input, shape index: {}]
  %s7 = inlined_call_operand.vmem [shape: f32[1,32], index: 7, kind: input, shape index: {}]
  %s8 = inlined_call_operand.vmem [shape: f32[1,128], index: 8, kind: input, shape index: {}]
  %s9 = inlined_call_operand.hbm [shape: bf16[2,256,128], index: 9, kind: output, shape index: {}]
  %s10 = sld [smem:[#allocation0]]
  $region77: #{tpu_custom_call.1} parent=0
    _
  %s12 = ssub.s32 1, %s10
  %s13 = scalar_select 0, %s12, %s10
  $region1: #{tpu_custom_call.1} parent=0
    #allocation2 [shape = 'u8[8192]{0}', space=vmem, size = 0x2000, scoped, tag = 'input window, operand 1']
    #allocation3 [shape = 's32[2]{0}', space=sflag, size = 0x8, scoped, tag = 'scoped memory for tpu_custom_call.1']
    #allocation4 [shape = 's32[2]{0}', space=sflag, size = 0x8, scoped, tag = 'scoped memory for tpu_custom_call.1']
    #allocation5 [shape = 'u8[8192]{0}', space=vmem, size = 0x2000, scoped, tag = 'input window, operand 2']
    #allocation6 [shape = 's32[2]{0}', space=sflag, size = 0x8, scoped, tag = 'scoped memory for tpu_custom_call.1']
    #allocation7 [shape = 'u8[32768]{0}', space=vmem, size = 0x8000, scoped, tag = 'output window, operand 0']
    %14 = vsyncpa [#allocation3], 0
    %s15 = scalar_lea.sflag [#allocation3], 1
    %16 = vsyncpa %s15, 0
    %17 = vsyncpa [#allocation6], 0
    %s18 = scalar_lea.sflag [#allocation6], 1
    %19 = vsyncpa %s18, 0
    %20 = vsyncpa [#allocation4], 0
    %s21 = scalar_lea.sflag [#allocation4], 1
    %22 = vsyncpa %s21, 0
    loop: start=0, step=1, limit=10
    $region2: #{tpu_custom_call.1} parent=1 // loop_pre_header
      _
    $region3: #{tpu_custom_call.1} parent=1 // loop_header
      %s24 = sphi 0, %s28
      %p25 = scmp.ge.s32.totalorder %s24, 10
      %s31 = sphi 0, %s43
      %s32 = sphi 0, %s39
      %s33 = sphi 0, %s31
      %s34 = sphi 0, %s32
      %s35 = sphi 0, %s33
      %s36 = sphi 0, %s34
      %s48 = sphi 0, %s50
      %s51 = sphi 0, %s48
      %s52 = sphi 0, %s51
      %s68 = sphi 0, %s52
      %s84 = sphi 0, %s86
      %s87 = sphi 0, %s84
      %s88 = sphi 0, %s87
      %s104 = sphi 0, %s88
      %s120 = sphi 0, %s122
      %s123 = sphi 0, %s120
      %s124 = sphi 0, %s123
      %s140 = sphi 0, %s124
      %s144 = sphi 0, %s144
      %s146 = sphi 0, %s144
      %s147 = sphi 0, %s146
      %s161 = sphi 0, %s147
      %s165 = sphi 0, %s165
      %s167 = sphi 0, %s165
      %s168 = sphi 0, %s167
      %s182 = sphi 0, %s168
      %s186 = sphi 0, %s186
      %s188 = sphi 0, %s186
      %s189 = sphi 0, %s188
      %s203 = sphi 0, %s189
      %s207 = sphi 0, %s207
      %s209 = sphi 0, %s207
      %s210 = sphi 0, %s209
      %s224 = sphi 0, %s210
      %s228 = sphi 0, %s228
      %s230 = sphi 0, %s228
      %s231 = sphi 0, %s230
      %s245 = sphi 0, %s231
      %s249 = sphi 0, %s249
      %s251 = sphi 0, %s249
      %s252 = sphi 0, %s251
      %s266 = sphi 0, %s252
      %s274 = sphi 0, %s276
      %s277 = sphi 0, %s274
      %s278 = sphi 0, %s277
      %s294 = sphi 0, %s278
    $region4: #{tpu_custom_call.1} parent=1 // loop_header_branch
      %27 = sbr.rel (%p25) target = $region8
    $region5: #{tpu_custom_call.1} parent=1 // loop_body
      %s29 = ssub.s32 %s24, 1
      %s30 = ssub.s32 %s24, 2
      %s37 = sadd.s32 1, %s32
      %p38 = scmp.ge.s32.totalorder %s37, 4
      %s39 = scalar_select %p38, 0, %s37
      %s40 = sadd.s32 1, %s31
      %s41 = scalar_select %p38, %s40, %s31
      %p42 = scmp.ge.s32.totalorder %s41, 2
      %s43 = scalar_select %p42, 0, %s41
      %s44 = ssub.s32 %s31, %s43
      %s45 = ssub.s32 %s32, %s39
      %s46 = sor.u32 %s44, %s45
      %p47 = scmp.eq.s32.totalorder %s46, 0
      %s49 = sadd.s32 %s48, 1
      %s50 = scalar_select %p47, %s48, %s49
      %p53 = pneg %p47
      %p54 = scmp.eq.s32.totalorder %s24, 7
      %p55 = por %p53, %p54
      %p56 = scmp.ne.s32.totalorder %s48, %s51
      %p57 = scmp.eq.s32.totalorder %s24, 0
      %p58 = por %p56, %p57
      %p59 = scmp.ne.s32.totalorder %s48, %s51
      %p60 = scmp.eq.s32.totalorder %s29, 7
      %p61 = por %p59, %p60
      %p62 = scmp.ne.s32.totalorder %s51, %s52
      %p63 = scmp.eq.s32.totalorder %s29, 0
      %p64 = por %p62, %p63
      %p65 = scmp.ne.s32.totalorder %s51, %s52
      %p66 = scmp.eq.s32.totalorder %s30, 7
      %p67 = por %p65, %p66
      %p69 = scmp.ne.s32.totalorder %s52, %s68
      %p70 = scmp.eq.s32.totalorder %s30, 0
      %p71 = por %p69, %p70
      %s72 = smul.u32 %s32, 4
      %s73 = ssub.s32 %s72, 1
      %p74 = scmp.gt.s32.totalorder %s73, 0
      %s75 = scalar_select %p74, %s73, 0
      %s76 = smul.u32 %s39, 4
      %s77 = ssub.s32 %s76, 1
      %p78 = scmp.gt.s32.totalorder %s77, 0
      %s79 = scalar_select %p78, %s77, 0
      %s80 = ssub.s32 %s31, %s43
      %s81 = ssub.s32 %s75, %s79
      %s82 = sor.u32 %s80, %s81
      %p83 = scmp.eq.s32.totalorder %s82, 0
      %s85 = sadd.s32 %s84, 1
      %s86 = scalar_select %p83, %s84, %s85
      %p89 = pneg %p83
      %p90 = scmp.eq.s32.totalorder %s24, 7
      %p91 = por %p89, %p90
      %p92 = scmp.ne.s32.totalorder %s84, %s87
      %p93 = scmp.eq.s32.totalorder %s24, 0
      %p94 = por %p92, %p93
      %p95 = scmp.ne.s32.totalorder %s84, %s87
      %p96 = scmp.eq.s32.totalorder %s29, 7
      %p97 = por %p95, %p96
      %p98 = scmp.ne.s32.totalorder %s87, %s88
      %p99 = scmp.eq.s32.totalorder %s29, 0
      %p100 = por %p98, %p99
      %p101 = scmp.ne.s32.totalorder %s87, %s88
      %p102 = scmp.eq.s32.totalorder %s30, 7
      %p103 = por %p101, %p102
      %p105 = scmp.ne.s32.totalorder %s88, %s104
      %p106 = scmp.eq.s32.totalorder %s30, 0
      %p107 = por %p105, %p106
      %s108 = sadd.s32 %s32, 1
      %s109 = smul.u32 %s108, 4
      %p110 = scmp.lt.s32.totalorder %s109, 15
      %s111 = scalar_select %p110, %s109, 15
      %s112 = sadd.s32 %s39, 1
      %s113 = smul.u32 %s112, 4
      %p114 = scmp.lt.s32.totalorder %s113, 15
      %s115 = scalar_select %p114, %s113, 15
      %s116 = ssub.s32 %s31, %s43
      %s117 = ssub.s32 %s111, %s115
      %s118 = sor.u32 %s116, %s117
      %p119 = scmp.eq.s32.totalorder %s118, 0
      %s121 = sadd.s32 %s120, 1
      %s122 = scalar_select %p119, %s120, %s121
      %p125 = pneg %p119
      %p126 = scmp.eq.s32.totalorder %s24, 7
      %p127 = por %p125, %p126
      %p128 = scmp.ne.s32.totalorder %s120, %s123
      %p129 = scmp.eq.s32.totalorder %s24, 0
      %p130 = por %p128, %p129
      %p131 = scmp.ne.s32.totalorder %s120, %s123
      %p132 = scmp.eq.s32.totalorder %s29, 7
      %p133 = por %p131, %p132
      %p134 = scmp.ne.s32.totalorder %s123, %s124
      %p135 = scmp.eq.s32.totalorder %s29, 0
      %p136 = por %p134, %p135
      %p137 = scmp.ne.s32.totalorder %s123, %s124
      %p138 = scmp.eq.s32.totalorder %s30, 7
      %p139 = por %p137, %p138
      %p141 = scmp.ne.s32.totalorder %s124, %s140
      %p142 = scmp.eq.s32.totalorder %s30, 0
      %p143 = por %p141, %p142
      %s145 = sadd.s32 %s144, 1
      %p148 = scmp.eq.s32.totalorder %s24, 7
      %p149 = scmp.ne.s32.totalorder %s144, %s146
      %p150 = scmp.eq.s32.totalorder %s24, 0
      %p151 = por %p149, %p150
      %p152 = scmp.ne.s32.totalorder %s144, %s146
      %p153 = scmp.eq.s32.totalorder %s29, 7
      %p154 = por %p152, %p153
      %p155 = scmp.ne.s32.totalorder %s146, %s147
      %p156 = scmp.eq.s32.totalorder %s29, 0
      %p157 = por %p155, %p156
      %p158 = scmp.ne.s32.totalorder %s146, %s147
      %p159 = scmp.eq.s32.totalorder %s30, 7
      %p160 = por %p158, %p159
      %p162 = scmp.ne.s32.totalorder %s147, %s161
      %p163 = scmp.eq.s32.totalorder %s30, 0
      %p164 = por %p162, %p163
      %s166 = sadd.s32 %s165, 1
      %p169 = scmp.eq.s32.totalorder %s24, 7
      %p170 = scmp.ne.s32.totalorder %s165, %s167
      %p171 = scmp.eq.s32.totalorder %s24, 0
      %p172 = por %p170, %p171
      %p173 = scmp.ne.s32.totalorder %s165, %s167
      %p174 = scmp.eq.s32.totalorder %s29, 7
      %p175 = por %p173, %p174
      %p176 = scmp.ne.s32.totalorder %s167, %s168
      %p177 = scmp.eq.s32.totalorder %s29, 0
      %p178 = por %p176, %p177
      %p179 = scmp.ne.s32.totalorder %s167, %s168
      %p180 = scmp.eq.s32.totalorder %s30, 7
      %p181 = por %p179, %p180
      %p183 = scmp.ne.s32.totalorder %s168, %s182
      %p184 = scmp.eq.s32.totalorder %s30, 0
      %p185 = por %p183, %p184
      %s187 = sadd.s32 %s186, 1
      %p190 = scmp.eq.s32.totalorder %s24, 7
      %p191 = scmp.ne.s32.totalorder %s186, %s188
      %p192 = scmp.eq.s32.totalorder %s24, 0
      %p193 = por %p191, %p192
      %p194 = scmp.ne.s32.totalorder %s186, %s188
      %p195 = scmp.eq.s32.totalorder %s29, 7
      %p196 = por %p194, %p195
      %p197 = scmp.ne.s32.totalorder %s188, %s189
      %p198 = scmp.eq.s32.totalorder %s29, 0
      %p199 = por %p197, %p198
      %p200 = scmp.ne.s32.totalorder %s188, %s189
      %p201 = scmp.eq.s32.totalorder %s30, 7
      %p202 = por %p200, %p201
      %p204 = scmp.ne.s32.totalorder %s189, %s203
      %p205 = scmp.eq.s32.totalorder %s30, 0
      %p206 = por %p204, %p205
      %s208 = sadd.s32 %s207, 1
      %p211 = scmp.eq.s32.totalorder %s24, 7
      %p212 = scmp.ne.s32.totalorder %s207, %s209
      %p213 = scmp.eq.s32.totalorder %s24, 0
      %p214 = por %p212, %p213
      %p215 = scmp.ne.s32.totalorder %s207, %s209
      %p216 = scmp.eq.s32.totalorder %s29, 7
      %p217 = por %p215, %p216
      %p218 = scmp.ne.s32.totalorder %s209, %s210
      %p219 = scmp.eq.s32.totalorder %s29, 0
      %p220 = por %p218, %p219
      %p221 = scmp.ne.s32.totalorder %s209, %s210
      %p222 = scmp.eq.s32.totalorder %s30, 7
      %p223 = por %p221, %p222
      %p225 = scmp.ne.s32.totalorder %s210, %s224
      %p226 = scmp.eq.s32.totalorder %s30, 0
      %p227 = por %p225, %p226
      %s229 = sadd.s32 %s228, 1
      %p232 = scmp.eq.s32.totalorder %s24, 7
      %p233 = scmp.ne.s32.totalorder %s228, %s230
      %p234 = scmp.eq.s32.totalorder %s24, 0
      %p235 = por %p233, %p234
      %p236 = scmp.ne.s32.totalorder %s228, %s230
      %p237 = scmp.eq.s32.totalorder %s29, 7
      %p238 = por %p236, %p237
      %p239 = scmp.ne.s32.totalorder %s230, %s231
      %p240 = scmp.eq.s32.totalorder %s29, 0
      %p241 = por %p239, %p240
      %p242 = scmp.ne.s32.totalorder %s230, %s231
      %p243 = scmp.eq.s32.totalorder %s30, 7
      %p244 = por %p242, %p243
      %p246 = scmp.ne.s32.totalorder %s231, %s245
      %p247 = scmp.eq.s32.totalorder %s30, 0
      %p248 = por %p246, %p247
      %s250 = sadd.s32 %s249, 1
      %p253 = scmp.eq.s32.totalorder %s24, 7
      %p254 = scmp.ne.s32.totalorder %s249, %s251
      %p255 = scmp.eq.s32.totalorder %s24, 0
      %p256 = por %p254, %p255
      %p257 = scmp.ne.s32.totalorder %s249, %s251
      %p258 = scmp.eq.s32.totalorder %s29, 7
      %p259 = por %p257, %p258
      %p260 = scmp.ne.s32.totalorder %s251, %s252
      %p261 = scmp.eq.s32.totalorder %s29, 0
      %p262 = por %p260, %p261
      %p263 = scmp.ne.s32.totalorder %s251, %s252
      %p264 = scmp.eq.s32.totalorder %s30, 7
      %p265 = por %p263, %p264
      %p267 = scmp.ne.s32.totalorder %s252, %s266
      %p268 = scmp.eq.s32.totalorder %s30, 0
      %p269 = por %p267, %p268
      %s270 = ssub.s32 %s31, %s43
      %s271 = ssub.s32 %s32, %s39
      %s272 = sor.u32 %s270, %s271
      %p273 = scmp.eq.s32.totalorder %s272, 0
      %s275 = sadd.s32 %s274, 1
      %s276 = scalar_select %p273, %s274, %s275
      %p279 = pneg %p273
      %p280 = scmp.eq.s32.totalorder %s24, 7
      %p281 = por %p279, %p280
      %p282 = scmp.ne.s32.totalorder %s274, %s277
      %p283 = scmp.eq.s32.totalorder %s24, 0
      %p284 = por %p282, %p283
      %p285 = scmp.ne.s32.totalorder %s274, %s277
      %p286 = scmp.eq.s32.totalorder %s29, 7
      %p287 = por %p285, %p286
      %p288 = scmp.ne.s32.totalorder %s277, %s278
      %p289 = scmp.eq.s32.totalorder %s29, 0
      %p290 = por %p288, %p289
      %p291 = scmp.ne.s32.totalorder %s277, %s278
      %p292 = scmp.eq.s32.totalorder %s30, 7
      %p293 = por %p291, %p292
      %p295 = scmp.ne.s32.totalorder %s278, %s294
      %p296 = scmp.eq.s32.totalorder %s30, 0
      %p297 = por %p295, %p296
      %p298 = scmp.le.s32.totalorder 1, %s24
      %p299 = scmp.lt.s32.totalorder %s24, 9
      %p300 = pnand %p298, %p299
      %p301 = pneg %p300
      // Predicated region
      $region9: #{tpu_custom_call.1} parent=5 // pred_check
        _
      $region10: #{tpu_custom_call.1} parent=5 // pred_check_branch
        %303 = sbr.rel (%p300) target = $region12
      $region11: #{tpu_custom_call.1} parent=5 // pred_region
        %s304 = ssub.s32 %s24, 1
        // Predicated region
        $region13: #{tpu_custom_call.1} parent=11 // pred_check
          %p305 = pneg %p157
        $region14: #{tpu_custom_call.1} parent=11 // pred_check_branch
          %307 = sbr.rel (%p305) target = $region16
        $region15: #{tpu_custom_call.1} parent=11 // pred_region
          _
        $region16: #{tpu_custom_call.1} parent=11 // pred_fallthru
          _
        // Predicated region
        $region17: #{tpu_custom_call.1} parent=11 // pred_check
          %p308 = pneg %p178
        $region18: #{tpu_custom_call.1} parent=11 // pred_check_branch
          %310 = sbr.rel (%p308) target = $region20
        $region19: #{tpu_custom_call.1} parent=11 // pred_region
          _
        $region20: #{tpu_custom_call.1} parent=11 // pred_fallthru
          _
        // Predicated region
        $region21: #{tpu_custom_call.1} parent=11 // pred_check
          %p311 = pneg %p199
        $region22: #{tpu_custom_call.1} parent=11 // pred_check_branch
          %313 = sbr.rel (%p311) target = $region24
        $region23: #{tpu_custom_call.1} parent=11 // pred_region
          _
        $region24: #{tpu_custom_call.1} parent=11 // pred_fallthru
          _
        // Predicated region
        $region25: #{tpu_custom_call.1} parent=11 // pred_check
          %p314 = pneg %p220
        $region26: #{tpu_custom_call.1} parent=11 // pred_check_branch
          %316 = sbr.rel (%p314) target = $region28
        $region27: #{tpu_custom_call.1} parent=11 // pred_region
          _
        $region28: #{tpu_custom_call.1} parent=11 // pred_fallthru
          _
        // Predicated region
        $region29: #{tpu_custom_call.1} parent=11 // pred_check
          %p317 = pneg %p241
        $region30: #{tpu_custom_call.1} parent=11 // pred_check_branch
          %319 = sbr.rel (%p317) target = $region32
        $region31: #{tpu_custom_call.1} parent=11 // pred_region
          _
        $region32: #{tpu_custom_call.1} parent=11 // pred_fallthru
          _
        // Predicated region
        $region33: #{tpu_custom_call.1} parent=11 // pred_check
          %p320 = pneg %p262
        $region34: #{tpu_custom_call.1} parent=11 // pred_check_branch
          %322 = sbr.rel (%p320) target = $region36
        $region35: #{tpu_custom_call.1} parent=11 // pred_region
          _
        $region36: #{tpu_custom_call.1} parent=11 // pred_fallthru
          _
      $region12: #{tpu_custom_call.1} parent=5 // pred_fallthru
        _
      %p323 = scmp.lt.s32.totalorder %s24, 8
      // Predicated region
      $region37: #{tpu_custom_call.1} parent=5 // pred_check
        %p324 = pneg %p323
      $region38: #{tpu_custom_call.1} parent=5 // pred_check_branch
        %326 = sbr.rel (%p324) target = $region40
      $region39: #{tpu_custom_call.1} parent=5 // pred_region
        // Predicated region
        $region41: #{tpu_custom_call.1} parent=39 // pred_check
          %p327 = pneg %p58
        $region42: #{tpu_custom_call.1} parent=39 // pred_check_branch
          %329 = sbr.rel (%p327) target = $region44
        $region43: #{tpu_custom_call.1} parent=39 // pred_region
          %s330 = smul.u32 8, %s32
          %p331 = scmp.lt.s32.totalorder %s31, 1
          %s332 = scalar_select %p331, %s31, 1
          %p333 = scmp.lt.s32.totalorder %s330, 31
          %s334 = scalar_select %p333, %s330, 31
          %s335 = smul.addr %s332, 32
          %s336 = sadd.s32 %s334, %s335
          %s337 = smul.addr %s336, 4
          %s338 = scalar_lea.vmem %s0, %s337
          %s339 = smul.u32 8, %s32
        $region44: #{tpu_custom_call.1} parent=39 // pred_fallthru
          _
        // Predicated region
        $region45: #{tpu_custom_call.1} parent=39 // pred_check
          %p340 = pneg %p94
        $region46: #{tpu_custom_call.1} parent=39 // pred_check_branch
          %342 = sbr.rel (%p340) target = $region48
        $region47: #{tpu_custom_call.1} parent=39 // pred_region
          %s343 = sand.u32 %s84, 1
          %s344 = scalar_lea.sflag [#allocation3], %s343
          %s345 = sand.u32 %s84, 1
          %s346 = smul.addr %s345, 8
          %s347 = scalar_lea.vmem [#allocation2], %s346
          %s348 = smul.u32 %s32, 4
          %s349 = ssub.s32 %s348, 1
          %p350 = scmp.gt.s32.totalorder %s349, 0
          %s351 = scalar_select %p350, %s349, 0
          %s352 = smul.u32 2, %s351
          %s354 = ssub.s32 128, 128
          %355 = vsyncadd %s344, %s354
          %s356 = smul.addr %s31, 32
          %s357 = sadd.s32 %s352, %s356
          %s358 = smul.addr %s357, 64
          %s359 = scalar_lea.hbm %s1, %s358
          %s360 = sshll.u32 %s347, 4
          %s361 = int_to_ptr.vmem [resolvable:$true] %s360
          %366 = dma.hbm_to_vmem [thread:$0]  %s359, 128, %s361, %s344, 64, 64, 4
        $region48: #{tpu_custom_call.1} parent=39 // pred_fallthru
          _
        // Predicated region
        $region49: #{tpu_custom_call.1} parent=39 // pred_check
          %p367 = pneg %p130
        $region50: #{tpu_custom_call.1} parent=39 // pred_check_branch
          %369 = sbr.rel (%p367) target = $region52
        $region51: #{tpu_custom_call.1} parent=39 // pred_region
          %s370 = sand.u32 %s120, 1
          %s371 = scalar_lea.sflag [#allocation6], %s370
          %s372 = sand.u32 %s120, 1
          %s373 = smul.addr %s372, 8
          %s374 = scalar_lea.vmem [#allocation5], %s373
          %s375 = sadd.s32 %s32, 1
          %s376 = smul.u32 %s375, 4
          %p377 = scmp.lt.s32.totalorder %s376, 15
          %s378 = scalar_select %p377, %s376, 15
          %s379 = smul.u32 2, %s378
          %s381 = ssub.s32 128, 128
          %382 = vsyncadd %s371, %s381
          %s383 = smul.addr %s31, 32
          %s384 = sadd.s32 %s379, %s383
          %s385 = smul.addr %s384, 64
          %s386 = scalar_lea.hbm %s2, %s385
          %s387 = sshll.u32 %s374, 4
          %s388 = int_to_ptr.vmem [resolvable:$true] %s387
          %393 = dma.hbm_to_vmem [thread:$0]  %s386, 128, %s388, %s371, 64, 64, 4
        $region52: #{tpu_custom_call.1} parent=39 // pred_fallthru
          _
      $region40: #{tpu_custom_call.1} parent=5 // pred_fallthru
        _
      %p394 = scmp.le.s32.totalorder 1, %s24
      %p395 = scmp.lt.s32.totalorder %s24, 9
      %p396 = pnand %p394, %p395
      %p397 = pneg %p396
      // Predicated region
      $region53: #{tpu_custom_call.1} parent=5 // pred_check
        _
      $region54: #{tpu_custom_call.1} parent=5 // pred_check_branch
        %399 = sbr.rel (%p396) target = $region56
      $region55: #{tpu_custom_call.1} parent=5 // pred_region
        %s400 = ssub.s32 %s24, 1
        %s401 = sand.u32 %s87, 1
        %s402 = scalar_lea.sflag [#allocation3], %s401
        %s403 = sand.u32 %s87, 1
        %s404 = smul.addr %s403, 8
        %s405 = scalar_lea.vmem [#allocation2], %s404
        // Predicated region
        $region57: #{tpu_custom_call.1} parent=55 // pred_check
          %p406 = pneg %p100
        $region58: #{tpu_custom_call.1} parent=55 // pred_check_branch
          %408 = sbr.rel (%p406) target = $region60
        $region59: #{tpu_custom_call.1} parent=55 // pred_region
          %409 = dma.done %s402, 128
        $region60: #{tpu_custom_call.1} parent=55 // pred_fallthru
          _
        %s410 = sand.u32 %s123, 1
        %s411 = scalar_lea.sflag [#allocation6], %s410
        %s412 = sand.u32 %s123, 1
        %s413 = smul.addr %s412, 8
        %s414 = scalar_lea.vmem [#allocation5], %s413
        // Predicated region
        $region61: #{tpu_custom_call.1} parent=55 // pred_check
          %p415 = pneg %p136
        $region62: #{tpu_custom_call.1} parent=55 // pred_check_branch
          %417 = sbr.rel (%p415) target = $region64
        $region63: #{tpu_custom_call.1} parent=55 // pred_region
          %418 = dma.done %s411, 128
        $region64: #{tpu_custom_call.1} parent=55 // pred_fallthru
          _
        %s419 = smul.u32 8, %s34
        %p420 = scmp.lt.s32.totalorder %s33, 1
        %s421 = scalar_select %p420, %s33, 1
        %p422 = scmp.lt.s32.totalorder %s419, 31
        %s423 = scalar_select %p422, %s419, 31
        %s424 = smul.addr %s421, 32
        %s425 = sadd.s32 %s423, %s424
        %s426 = smul.addr %s425, 4
        %s427 = scalar_lea.vmem %s0, %s426
        %p428 = pneg %p64
        %p429 = pneg %p61
        %s430 = sand.u32 %s87, 1
        %s431 = scalar_lea.sflag [#allocation3], %s430
        %s432 = sand.u32 %s87, 1
        %s433 = smul.addr %s432, 8
        %s434 = scalar_lea.vmem [#allocation2], %s433
        %p435 = pneg %p100
        %p436 = pneg %p97
        %s437 = sand.u32 %s123, 1
        %s438 = scalar_lea.sflag [#allocation6], %s437
        %s439 = sand.u32 %s123, 1
        %s440 = smul.addr %s439, 8
        %s441 = scalar_lea.vmem [#allocation5], %s440
        %p442 = pneg %p136
        %p443 = pneg %p133
        %p444 = pneg %p157
        %p445 = pneg %p154
        %p446 = pneg %p178
        %p447 = pneg %p175
        %p448 = pneg %p199
        %p449 = pneg %p196
        %p450 = pneg %p220
        %p451 = pneg %p217
        %p452 = pneg %p241
        %p453 = pneg %p238
        %p454 = pneg %p262
        %p455 = pneg %p259
        %p456 = pneg %p290
        %p457 = pneg %p287
        %s458 = sand.u32 %s277, 1
        %s459 = scalar_lea.sflag [#allocation4], %s458
        %s460 = sand.u32 %s277, 1
        %s461 = smul.addr %s460, 32
        %s462 = scalar_lea.vmem [#allocation7], %s461
        %s463 = smul.u32 8, %s34
        %p464 = scmp.lt.s32.totalorder %s33, 1
        %s465 = scalar_select %p464, %s33, 1
        %p466 = scmp.lt.s32.totalorder %s463, 31
        %s467 = scalar_select %p466, %s463, 31
        %s468 = smul.addr %s465, 32
        %s469 = sadd.s32 %s467, %s468
        %s470 = smul.addr %s469, 4
        %s471 = scalar_lea.vmem %s0, %s470
        %s472 = smul.u32 8, %s34
        %s473 = smul.u32 %s34, 4
        %s474 = ssub.s32 %s473, 1
        %p475 = scmp.gt.s32.totalorder %s474, 0
        %s476 = scalar_select %p475, %s474, 0
        %s477 = smul.u32 2, %s476
        %s478 = sadd.s32 %s34, 1
        %s479 = smul.u32 %s478, 4
        %p480 = scmp.lt.s32.totalorder %s479, 15
        %s481 = scalar_select %p480, %s479, 15
        %s482 = smul.u32 2, %s481
        %s483 = smul.u32 8, %s34
        %v485 = vld [vmem:[%s471] sm:$0xf]
        %v486 = vld [vmem:[%s471 + $0x4] sm:$0xf]
        %v487 = vld [vmem:[%s471 + $0x8] sm:$0xf]
        %v488 = vld [vmem:[%s471 + $0xc] sm:$0xf]
        %v489 = vld [vmem:[%s471 + $0x10] sm:$0xf]
        %v490 = vld [vmem:[%s471 + $0x14] sm:$0xf]
        %v491 = vld [vmem:[%s471 + $0x18] sm:$0xf]
        %v492 = vld [vmem:[%s471 + $0x1c] sm:$0xf]
        %v493 = vld [vmem:[%s3] sm:$0xf]
        %v494 = vld [vmem:[%s3 + $0x4] sm:$0xf]
        %v495 = vld [vmem:[%s3 + $0x8] sm:$0xf]
        %v496 = vld [vmem:[%s3 + $0xc] sm:$0xf]
        %v497 = vld [vmem:[%s3 + $0x10] sm:$0xf]
        %v498 = vld [vmem:[%s3 + $0x14] sm:$0xf]
        %v499 = vld [vmem:[%s3 + $0x18] sm:$0xf]
        %v500 = vld [vmem:[%s3 + $0x1c] sm:$0xf]
        %v501 = vld [vmem:[%s3 + $0x20] sm:$0xf]
        %v502 = vld [vmem:[%s3 + $0x24] sm:$0xf]
        %v503 = vld [vmem:[%s3 + $0x28] sm:$0xf]
        %v504 = vld [vmem:[%s3 + $0x2c] sm:$0xf]
        %v505 = vld [vmem:[%s3 + $0x30] sm:$0xf]
        %v506 = vld [vmem:[%s3 + $0x34] sm:$0xf]
        %v507 = vld [vmem:[%s3 + $0x38] sm:$0xf]
        %v508 = vld [vmem:[%s3 + $0x3c] sm:$0xf]
        %v509 = vld [vmem:[%s6] sm:$0x1]
        %v511 = vlaneseq
        %v512 = vshrl.u32 %v511, 7
        %v513 = vsub.s32 0, %v512
        %v514 = vrot.slane %v509, %v513
        %v524 = vunpack.c.l.b16 %v485
        %v525 = vunpack.c.l.b16 %v486
        %v526 = vunpack.c.l.b16 %v487
        %v527 = vunpack.c.l.b16 %v488
        %v528 = vunpack.c.l.b16 %v489
        %v529 = vunpack.c.l.b16 %v490
        %v530 = vunpack.c.l.b16 %v491
        %v531 = vunpack.c.l.b16 %v492
        %v532 = vpack.c.b16 %v525, %v524
        %v533 = vpack.c.b16 %v527, %v526
        %v534 = vpack.c.b16 %v529, %v528
        %v535 = vpack.c.b16 %v531, %v530
        %v556 = vunpack.c.l.b16 %v493
        %v557 = vunpack.c.l.b16 %v494
        %v558 = vunpack.c.l.b16 %v495
        %v559 = vunpack.c.l.b16 %v496
        %v560 = vunpack.c.l.b16 %v497
        %v561 = vunpack.c.l.b16 %v498
        %v562 = vunpack.c.l.b16 %v499
        %v563 = vunpack.c.l.b16 %v500
        %v564 = vunpack.c.l.b16 %v501
        %v565 = vunpack.c.l.b16 %v502
        %v566 = vunpack.c.l.b16 %v503
        %v567 = vunpack.c.l.b16 %v504
        %v568 = vunpack.c.l.b16 %v505
        %v569 = vunpack.c.l.b16 %v506
        %v570 = vunpack.c.l.b16 %v507
        %v571 = vunpack.c.l.b16 %v508
        %v572 = vpack.c.b16 %v557, %v556
        %v573 = vpack.c.b16 %v559, %v558
        %v574 = vpack.c.b16 %v561, %v560
        %v575 = vpack.c.b16 %v563, %v562
        %v576 = vpack.c.b16 %v565, %v564
        %v577 = vpack.c.b16 %v567, %v566
        %v578 = vpack.c.b16 %v569, %v568
        %v579 = vpack.c.b16 %v571, %v570
        %588 = vmatprep.subr.bf16.mxu0 0
        %589 = vmatpush1.bf16.msra.mxu0 %v572
        %590 = vmatprep.subr.bf16.mxu0 0
        %591 = vmatpush1.bf16.msra.mxu0 %v573
        %592 = vmatprep.subr.bf16.mxu0 0
        %593 = vmatpush1.bf16.msra.mxu0 %v574
        %594 = vmatprep.subr.bf16.mxu0 0
        %595 = vmatpush1.bf16.msra.mxu0 %v575
        %596 = vmatprep.subr.bf16.mxu0 0
        %597 = vmatpush1.bf16.msra.mxu0 %v576
        %598 = vmatprep.subr.bf16.mxu0 0
        %599 = vmatpush1.bf16.msra.mxu0 %v577
        %600 = vmatprep.subr.bf16.mxu0 0
        %601 = vmatpush1.bf16.msra.mxu0 %v578
        %602 = vmatprep.subr.bf16.mxu0 0
        %603 = vmatpush1.bf16.msra.mxu0 %v579
        %604 = vmatprep.subr.bf16.mxu0 0
        %605 = vmatpush1.bf16.msra.mxu0 0
        %606 = vmatprep.subr.bf16.mxu0 0
        %607 = vmatpush1.bf16.msra.mxu0 0
        %608 = vmatprep.subr.bf16.mxu0 0
        %609 = vmatpush1.bf16.msra.mxu0 0
        %610 = vmatprep.subr.bf16.mxu0 0
        %611 = vmatpush1.bf16.msra.mxu0 0
        %612 = vmatprep.subr.bf16.mxu0 0
        %613 = vmatpush1.bf16.msra.mxu0 0
        %614 = vmatprep.subr.bf16.mxu0 0
        %615 = vmatpush1.bf16.msra.mxu0 0
        %616 = vmatprep.subr.bf16.mxu0 0
        %617 = vmatpush1.bf16.msra.mxu0 0
        %618 = vmatprep.subr.bf16.mxu0 0
        %619 = vmatpush1.bf16.msra.mxu0 0
        %620 = vmatprep.mubr.bf16.mxu0 0
        %621 = vmatmul.mubr.bf16.gmra.mrb[0].mxu0 %v532
        %v622 = vpop.f32.mrb[0].mxu0
        %v623 = vadd.f32 %v514, %v622
        %v624 = vpop.f32.mrb[0].mxu0
        %v625 = vpop.f32.mrb[0].mxu0
        %v626 = vadd.f32 %v514, %v625
        %v627 = vpop.f32.mrb[0].mxu0
        %628 = vmatprep.mubr.bf16.mxu0 0
        %629 = vmatmul.mubr.bf16.gmra.mrb[0].mxu0 %v533
        %v630 = vpop.f32.mrb[0].mxu0
        %v631 = vadd.f32 %v514, %v630
        %v632 = vpop.f32.mrb[0].mxu0
        %v633 = vpop.f32.mrb[0].mxu0
        %v634 = vadd.f32 %v514, %v633
        %v635 = vpop.f32.mrb[0].mxu0
        %636 = vmatprep.mubr.bf16.mxu0 0
        %637 = vmatmul.mubr.bf16.gmra.mrb[0].mxu0 %v534
        %v638 = vpop.f32.mrb[0].mxu0
        %v639 = vadd.f32 %v514, %v638
        %v640 = vpop.f32.mrb[0].mxu0
        %v641 = vpop.f32.mrb[0].mxu0
        %v642 = vadd.f32 %v514, %v641
        %v643 = vpop.f32.mrb[0].mxu0
        %644 = vmatprep.mubr.bf16.mxu0 0
        %645 = vmatmul.mubr.bf16.gmra.mrb[0].mxu0 %v535
        %v646 = vpop.f32.mrb[0].mxu0
        %v647 = vadd.f32 %v514, %v646
        %v648 = vpop.f32.mrb[0].mxu0
        %v649 = vpop.f32.mrb[0].mxu0
        %v650 = vadd.f32 %v514, %v649
        %v651 = vpop.f32.mrb[0].mxu0
        %652 = vdwg.mxu0
        %v653 = vmax.f32 %v623, 0.0
        %v654 = vmax.f32 %v626, 0.0
        %v655 = vmax.f32 %v631, 0.0
        %v656 = vmax.f32 %v634, 0.0
        %v657 = vmax.f32 %v639, 0.0
        %v658 = vmax.f32 %v642, 0.0
        %v659 = vmax.f32 %v647, 0.0
        %v660 = vmax.f32 %v650, 0.0
        %v661 = vld [vmem:[%s405] sm:$0xf]
        %v662 = vld [vmem:[%s405 + $0x4] sm:$0xf]
        %v665 = vunpack.c.l.b16 %v661
        %v666 = vunpack.c.l.b16 %v662
        %v667 = vpack.c.b16 %v666, %v665
        %669 = vmatprep.subr.bf16.mxu0 0
        %670 = vmatpush1.bf16.msra.mxu0 %v572
        %671 = vmatprep.subr.bf16.mxu0 0
        %672 = vmatpush1.bf16.msra.mxu0 %v573
        %673 = vmatprep.subr.bf16.mxu0 0
        %674 = vmatpush1.bf16.msra.mxu0 %v574
        %675 = vmatprep.subr.bf16.mxu0 0
        %676 = vmatpush1.bf16.msra.mxu0 %v575
        %677 = vmatprep.subr.bf16.mxu0 0
        %678 = vmatpush1.bf16.msra.mxu0 %v576
        %679 = vmatprep.subr.bf16.mxu0 0
        %680 = vmatpush1.bf16.msra.mxu0 %v577
        %681 = vmatprep.subr.bf16.mxu0 0
        %682 = vmatpush1.bf16.msra.mxu0 %v578
        %683 = vmatprep.subr.bf16.mxu0 0
        %684 = vmatpush1.bf16.msra.mxu0 %v579
        %685 = vmatprep.subr.bf16.mxu0 0
        %686 = vmatpush1.bf16.msra.mxu0 0
        %687 = vmatprep.subr.bf16.mxu0 0
        %688 = vmatpush1.bf16.msra.mxu0 0
        %689 = vmatprep.subr.bf16.mxu0 0
        %690 = vmatpush1.bf16.msra.mxu0 0
        %691 = vmatprep.subr.bf16.mxu0 0
        %692 = vmatpush1.bf16.msra.mxu0 0
        %693 = vmatprep.subr.bf16.mxu0 0
        %694 = vmatpush1.bf16.msra.mxu0 0
        %695 = vmatprep.subr.bf16.mxu0 0
        %696 = vmatpush1.bf16.msra.mxu0 0
        %697 = vmatprep.subr.bf16.mxu0 0
        %698 = vmatpush1.bf16.msra.mxu0 0
        %699 = vmatprep.subr.bf16.mxu0 0
        %700 = vmatpush1.bf16.msra.mxu0 0
        %701 = vmatprep.mubr.bf16.mxu0 0
        %702 = vmatmul.mubr.bf16.gmra.mrb[0].mxu0 %v667
        %v703 = vpop.f32.mrb[0].mxu0
        %v704 = vadd.f32 %v514, %v703
        %v705 = vpop.f32.mrb[0].mxu0
        %v706 = vpop.f32.mrb[0].mxu0
        %v707 = vadd.f32 %v514, %v706
        %v708 = vpop.f32.mrb[0].mxu0
        %709 = vdwg.mxu0
        %v710 = vmax.f32 %v704, 0.0
        %v711 = vmax.f32 %v707, 0.0
        %p712 = scmp.gt.s32.totalorder %s34, 0
        %s713 = scalar_select %p712, 1.0, 0.0
        %v714 = vstv %s713
        %v715 = vmul.f32 %v710, %v714
        %v716 = vmul.f32 %v711, %v714
        %v717 = vld [vmem:[%s414] sm:$0xf]
        %v718 = vld [vmem:[%s414 + $0x4] sm:$0xf]
        %v721 = vunpack.c.l.b16 %v717
        %v722 = vunpack.c.l.b16 %v718
        %v723 = vpack.c.b16 %v722, %v721
        %725 = vmatprep.subr.bf16.mxu0 0
        %726 = vmatpush1.bf16.msra.mxu0 %v572
        %727 = vmatprep.subr.bf16.mxu0 0
        %728 = vmatpush1.bf16.msra.mxu0 %v573
        %729 = vmatprep.subr.bf16.mxu0 0
        %730 = vmatpush1.bf16.msra.mxu0 %v574
        %731 = vmatprep.subr.bf16.mxu0 0
        %732 = vmatpush1.bf16.msra.mxu0 %v575
        %733 = vmatprep.subr.bf16.mxu0 0
        %734 = vmatpush1.bf16.msra.mxu0 %v576
        %735 = vmatprep.subr.bf16.mxu0 0
        %736 = vmatpush1.bf16.msra.mxu0 %v577
        %737 = vmatprep.subr.bf16.mxu0 0
        %738 = vmatpush1.bf16.msra.mxu0 %v578
        %739 = vmatprep.subr.bf16.mxu0 0
        %740 = vmatpush1.bf16.msra.mxu0 %v579
        %741 = vmatprep.subr.bf16.mxu0 0
        %742 = vmatpush1.bf16.msra.mxu0 0
        %743 = vmatprep.subr.bf16.mxu0 0
        %744 = vmatpush1.bf16.msra.mxu0 0
        %745 = vmatprep.subr.bf16.mxu0 0
        %746 = vmatpush1.bf16.msra.mxu0 0
        %747 = vmatprep.subr.bf16.mxu0 0
        %748 = vmatpush1.bf16.msra.mxu0 0
        %749 = vmatprep.subr.bf16.mxu0 0
        %750 = vmatpush1.bf16.msra.mxu0 0
        %751 = vmatprep.subr.bf16.mxu0 0
        %752 = vmatpush1.bf16.msra.mxu0 0
        %753 = vmatprep.subr.bf16.mxu0 0
        %754 = vmatpush1.bf16.msra.mxu0 0
        %755 = vmatprep.subr.bf16.mxu0 0
        %756 = vmatpush1.bf16.msra.mxu0 0
        %757 = vmatprep.mubr.bf16.mxu0 0
        %758 = vmatmul.mubr.bf16.gmra.mrb[0].mxu0 %v723
        %v759 = vpop.f32.mrb[0].mxu0
        %v760 = vadd.f32 %v514, %v759
        %v761 = vpop.f32.mrb[0].mxu0
        %v762 = vpop.f32.mrb[0].mxu0
        %v763 = vadd.f32 %v514, %v762
        %v764 = vpop.f32.mrb[0].mxu0
        %765 = vdwg.mxu0
        %v766 = vmax.f32 %v760, 0.0
        %v767 = vmax.f32 %v763, 0.0
        %s768 = sadd.s32 %s34, 1
        %p769 = scmp.lt.s32.totalorder %s768, 4
        %s770 = scalar_select %p769, 1.0, 0.0
        %v771 = vstv %s770
        %v772 = vmul.f32 %v766, %v771
        %v773 = vmul.f32 %v767, %v771
        %v774 = vlaneseq
        %v775 = vshrl.u32 %v774, 7
        %v776 = vadd.s32 %v775, 8
        %v777 = vadd.s32 %v775, 16
        %v778 = vadd.s32 %v775, 24
        %v779 = vadd.s32 %v775, 32
        %v780 = vadd.s32 %v775, 40
        %v781 = vadd.s32 %v775, 48
        %v782 = vadd.s32 %v775, 56
        %v783 = vadd.s32 %v775, 64
        %v784 = vadd.s32 %v775, 72
        %v785 = vadd.s32 %v775, 80
        %v786 = vadd.s32 %v775, 88
        %vm787 = vcmp.lt.s32.totalorder %v775, 0
        %v788 = vsub.s32 0, %v775
        %v789 = vsel %vm787, %v788, %v775
        %v790 = vshrl.u32 %v789, 4
        %v791 = vand.u32 %v789, 15
        %v792 = vsub.s32 0, %v791
        %v793 = vsel %vm787, %v792, %v791
        %vm794 = vcmp.lt.s32.totalorder %v776, 0
        %v795 = vsub.s32 0, %v776
        %v796 = vsel %vm794, %v795, %v776
        %v797 = vshrl.u32 %v796, 4
        %v798 = vand.u32 %v796, 15
        %v799 = vsub.s32 0, %v798
        %v800 = vsel %vm794, %v799, %v798
        %vm801 = vcmp.lt.s32.totalorder %v777, 0
        %v802 = vsub.s32 0, %v777
        %v803 = vsel %vm801, %v802, %v777
        %v804 = vshrl.u32 %v803, 4
        %v805 = vand.u32 %v803, 15
        %v806 = vsub.s32 0, %v805
        %v807 = vsel %vm801, %v806, %v805
        %vm808 = vcmp.lt.s32.totalorder %v778, 0
        %v809 = vsub.s32 0, %v778
        %v810 = vsel %vm808, %v809, %v778
        %v811 = vshrl.u32 %v810, 4
        %v812 = vand.u32 %v810, 15
        %v813 = vsub.s32 0, %v812
        %v814 = vsel %vm808, %v813, %v812
        %vm815 = vcmp.lt.s32.totalorder %v779, 0
        %v816 = vsub.s32 0, %v779
        %v817 = vsel %vm815, %v816, %v779
        %v818 = vshrl.u32 %v817, 4
        %v819 = vand.u32 %v817, 15
        %v820 = vsub.s32 0, %v819
        %v821 = vsel %vm815, %v820, %v819
        %vm822 = vcmp.lt.s32.totalorder %v780, 0
        %v823 = vsub.s32 0, %v780
        %v824 = vsel %vm822, %v823, %v780
        %v825 = vshrl.u32 %v824, 4
        %v826 = vand.u32 %v824, 15
        %v827 = vsub.s32 0, %v826
        %v828 = vsel %vm822, %v827, %v826
        %vm829 = vcmp.lt.s32.totalorder %v781, 0
        %v830 = vsub.s32 0, %v781
        %v831 = vsel %vm829, %v830, %v781
        %v832 = vshrl.u32 %v831, 4
        %v833 = vand.u32 %v831, 15
        %v834 = vsub.s32 0, %v833
        %v835 = vsel %vm829, %v834, %v833
        %vm836 = vcmp.lt.s32.totalorder %v782, 0
        %v837 = vsub.s32 0, %v782
        %v838 = vsel %vm836, %v837, %v782
        %v839 = vshrl.u32 %v838, 4
        %v840 = vand.u32 %v838, 15
        %v841 = vsub.s32 0, %v840
        %v842 = vsel %vm836, %v841, %v840
        %vm843 = vcmp.lt.s32.totalorder %v783, 0
        %v844 = vsub.s32 0, %v783
        %v845 = vsel %vm843, %v844, %v783
        %v846 = vshrl.u32 %v845, 4
        %v847 = vand.u32 %v845, 15
        %v848 = vsub.s32 0, %v847
        %v849 = vsel %vm843, %v848, %v847
        %vm850 = vcmp.lt.s32.totalorder %v784, 0
        %v851 = vsub.s32 0, %v784
        %v852 = vsel %vm850, %v851, %v784
        %v853 = vshrl.u32 %v852, 4
        %v854 = vand.u32 %v852, 15
        %v855 = vsub.s32 0, %v854
        %v856 = vsel %vm850, %v855, %v854
        %vm857 = vcmp.lt.s32.totalorder %v785, 0
        %v858 = vsub.s32 0, %v785
        %v859 = vsel %vm857, %v858, %v785
        %v860 = vshrl.u32 %v859, 4
        %v861 = vand.u32 %v859, 15
        %v862 = vsub.s32 0, %v861
        %v863 = vsel %vm857, %v862, %v861
        %vm864 = vcmp.lt.s32.totalorder %v786, 0
        %v865 = vsub.s32 0, %v786
        %v866 = vsel %vm864, %v865, %v786
        %v867 = vshrl.u32 %v866, 4
        %v868 = vand.u32 %v866, 15
        %v869 = vsub.s32 0, %v868
        %v870 = vsel %vm864, %v869, %v868
        %vm871 = vcmp.ne.s32.totalorder %v793, 0
        %vm872 = vcmp.ne.s32.totalorder %v800, 0
        %vm873 = vcmp.ne.s32.totalorder %v807, 0
        %vm874 = vcmp.ne.s32.totalorder %v814, 0
        %vm875 = vcmp.ne.s32.totalorder %v821, 0
        %vm876 = vcmp.ne.s32.totalorder %v828, 0
        %vm877 = vcmp.ne.s32.totalorder %v835, 0
        %vm878 = vcmp.ne.s32.totalorder %v842, 0
        %vm879 = vcmp.ne.s32.totalorder %v849, 0
        %vm880 = vcmp.ne.s32.totalorder %v856, 0
        %vm881 = vcmp.ne.s32.totalorder %v863, 0
        %vm882 = vcmp.ne.s32.totalorder %v870, 0
        %vm883 = vcmp.lt.s32.totalorder %v793, 0
        %vm884 = vcmp.lt.s32.totalorder %v800, 0
        %vm885 = vcmp.lt.s32.totalorder %v807, 0
        %vm886 = vcmp.lt.s32.totalorder %v814, 0
        %vm887 = vcmp.lt.s32.totalorder %v821, 0
        %vm888 = vcmp.lt.s32.totalorder %v828, 0
        %vm889 = vcmp.lt.s32.totalorder %v835, 0
        %vm890 = vcmp.lt.s32.totalorder %v842, 0
        %vm891 = vcmp.lt.s32.totalorder %v849, 0
        %vm892 = vcmp.lt.s32.totalorder %v856, 0
        %vm893 = vcmp.lt.s32.totalorder %v863, 0
        %vm894 = vcmp.lt.s32.totalorder %v870, 0
        %vm895 = vmand %vm883, %vm871
        %vm896 = vmand %vm884, %vm872
        %vm897 = vmand %vm885, %vm873
        %vm898 = vmand %vm886, %vm874
        %vm899 = vmand %vm887, %vm875
        %vm900 = vmand %vm888, %vm876
        %vm901 = vmand %vm889, %vm877
        %vm902 = vmand %vm890, %vm878
        %vm903 = vmand %vm891, %vm879
        %vm904 = vmand %vm892, %vm880
        %vm905 = vmand %vm893, %vm881
        %vm906 = vmand %vm894, %vm882
        %v907 = vadd.s32 %v793, 16
        %v908 = vadd.s32 %v800, 16
        %v909 = vadd.s32 %v807, 16
        %v910 = vadd.s32 %v814, 16
        %v911 = vadd.s32 %v821, 16
        %v912 = vadd.s32 %v828, 16
        %v913 = vadd.s32 %v835, 16
        %v914 = vadd.s32 %v842, 16
        %v915 = vadd.s32 %v849, 16
        %v916 = vadd.s32 %v856, 16
        %v917 = vadd.s32 %v863, 16
        %v918 = vadd.s32 %v870, 16
        %v919 = vsel %vm895, %v907, %v793
        %v920 = vsel %vm896, %v908, %v800
        %v921 = vsel %vm897, %v909, %v807
        %v922 = vsel %vm898, %v910, %v814
        %v923 = vsel %vm899, %v911, %v821
        %v924 = vsel %vm900, %v912, %v828
        %v925 = vsel %vm901, %v913, %v835
        %v926 = vsel %vm902, %v914, %v842
        %v927 = vsel %vm903, %v915, %v849
        %v928 = vsel %vm904, %v916, %v856
        %v929 = vsel %vm905, %v917, %v863
        %v930 = vsel %vm906, %v918, %v870
        %vm931 = vcmp.gt.s32.totalorder %v919, 0
        %vm932 = vcmp.gt.s32.totalorder %v920, 0
        %vm933 = vcmp.gt.s32.totalorder %v921, 0
        %vm934 = vcmp.gt.s32.totalorder %v922, 0
        %vm935 = vcmp.gt.s32.totalorder %v923, 0
        %vm936 = vcmp.gt.s32.totalorder %v924, 0
        %vm937 = vcmp.gt.s32.totalorder %v925, 0
        %vm938 = vcmp.gt.s32.totalorder %v926, 0
        %vm939 = vcmp.gt.s32.totalorder %v927, 0
        %vm940 = vcmp.gt.s32.totalorder %v928, 0
        %vm941 = vcmp.gt.s32.totalorder %v929, 0
        %vm942 = vcmp.gt.s32.totalorder %v930, 0
        %v943 = vrot.slane %v715, 7
        %v944 = vrot.slane %v716, 7
        %v945 = vrot.slane %v653, 7
        %v946 = vrot.slane %v654, 7
        %v947 = vrot.slane %v655, 7
        %v948 = vrot.slane %v656, 7
        %v949 = vrot.slane %v657, 7
        %v950 = vrot.slane %v658, 7
        %v951 = vrot.slane %v659, 7
        %v952 = vrot.slane %v660, 7
        %v953 = vrot.slane %v772, 7
        %v954 = vrot.slane %v773, 7
        %vm955 = vcmp.lt.s32.totalorder %v775, 1
        %v956 = vsel %vm955, %v953, %v954
        %v957 = vsel %vm955, %v952, %v953
        %v958 = vsel %vm955, %v951, %v952
        %v959 = vsel %vm955, %v950, %v951
        %v960 = vsel %vm955, %v949, %v950
        %v961 = vsel %vm955, %v948, %v949
        %v962 = vsel %vm955, %v947, %v948
        %v963 = vsel %vm955, %v946, %v947
        %v964 = vsel %vm955, %v945, %v946
        %v965 = vsel %vm955, %v944, %v945
        %v966 = vsel %vm955, %v943, %v944
        %v967 = vsel %vm955, %v954, %v943
        %v968 = vsel %vm931, 1, 0
        %v969 = vsel %vm932, 1, 0
        %v970 = vsel %vm933, 1, 0
        %v971 = vsel %vm934, 1, 0
        %v972 = vsel %vm935, 1, 0
        %v973 = vsel %vm936, 1, 0
        %v974 = vsel %vm937, 1, 0
        %v975 = vsel %vm938, 1, 0
        %v976 = vsel %vm939, 1, 0
        %v977 = vsel %vm940, 1, 0
        %v978 = vsel %vm941, 1, 0
        %v979 = vsel %vm942, 1, 0
        %vm980 = vcmp.eq.s32.totalorder %v968, 1
        %vm981 = vcmp.eq.s32.totalorder %v969, 1
        %vm982 = vcmp.eq.s32.totalorder %v970, 1
        %vm983 = vcmp.eq.s32.totalorder %v971, 1
        %vm984 = vcmp.eq.s32.totalorder %v972, 1
        %vm985 = vcmp.eq.s32.totalorder %v973, 1
        %vm986 = vcmp.eq.s32.totalorder %v974, 1
        %vm987 = vcmp.eq.s32.totalorder %v975, 1
        %vm988 = vcmp.eq.s32.totalorder %v976, 1
        %vm989 = vcmp.eq.s32.totalorder %v977, 1
        %vm990 = vcmp.eq.s32.totalorder %v978, 1
        %vm991 = vcmp.eq.s32.totalorder %v979, 1
        %v992 = vsel %vm980, %v967, 0.0
        %v993 = vsel %vm981, %v966, 0.0
        %v994 = vsel %vm982, %v965, 0.0
        %v995 = vsel %vm983, %v964, 0.0
        %v996 = vsel %vm984, %v963, 0.0
        %v997 = vsel %vm985, %v962, 0.0
        %v998 = vsel %vm986, %v961, 0.0
        %v999 = vsel %vm987, %v960, 0.0
        %v1000 = vsel %vm988, %v959, 0.0
        %v1001 = vsel %vm989, %v958, 0.0
        %v1002 = vsel %vm990, %v957, 0.0
        %v1003 = vsel %vm991, %v956, 0.0
        %vm1004 = vcmp.lt.s32.totalorder %v919, 15
        %vm1005 = vcmp.lt.s32.totalorder %v920, 15
        %vm1006 = vcmp.lt.s32.totalorder %v921, 15
        %vm1007 = vcmp.lt.s32.totalorder %v922, 15
        %vm1008 = vcmp.lt.s32.totalorder %v923, 15
        %vm1009 = vcmp.lt.s32.totalorder %v924, 15
        %vm1010 = vcmp.lt.s32.totalorder %v925, 15
        %vm1011 = vcmp.lt.s32.totalorder %v926, 15
        %vm1012 = vcmp.lt.s32.totalorder %v927, 15
        %vm1013 = vcmp.lt.s32.totalorder %v928, 15
        %vm1014 = vcmp.lt.s32.totalorder %v929, 15
        %vm1015 = vcmp.lt.s32.totalorder %v930, 15
        %v1016 = vrot.slane %v715, 1
        %v1017 = vrot.slane %v716, 1
        %v1018 = vrot.slane %v653, 1
        %v1019 = vrot.slane %v654, 1
        %v1020 = vrot.slane %v655, 1
        %v1021 = vrot.slane %v656, 1
        %v1022 = vrot.slane %v657, 1
        %v1023 = vrot.slane %v658, 1
        %v1024 = vrot.slane %v659, 1
        %v1025 = vrot.slane %v660, 1
        %v1026 = vrot.slane %v772, 1
        %v1027 = vrot.slane %v773, 1
        %vm1028 = vcmp.lt.s32.totalorder %v775, 7
        %v1029 = vsel %vm1028, %v1026, %v1027
        %v1030 = vsel %vm1028, %v1025, %v1026
        %v1031 = vsel %vm1028, %v1024, %v1025
        %v1032 = vsel %vm1028, %v1023, %v1024
        %v1033 = vsel %vm1028, %v1022, %v1023
        %v1034 = vsel %vm1028, %v1021, %v1022
        %v1035 = vsel %vm1028, %v1020, %v1021
        %v1036 = vsel %vm1028, %v1019, %v1020
        %v1037 = vsel %vm1028, %v1018, %v1019
        %v1038 = vsel %vm1028, %v1017, %v1018
        %v1039 = vsel %vm1028, %v1016, %v1017
        %v1040 = vsel %vm1028, %v1027, %v1016
        %v1041 = vsel %vm1004, 1, 0
        %v1042 = vsel %vm1005, 1, 0
        %v1043 = vsel %vm1006, 1, 0
        %v1044 = vsel %vm1007, 1, 0
        %v1045 = vsel %vm1008, 1, 0
        %v1046 = vsel %vm1009, 1, 0
        %v1047 = vsel %vm1010, 1, 0
        %v1048 = vsel %vm1011, 1, 0
        %v1049 = vsel %vm1012, 1, 0
        %v1050 = vsel %vm1013, 1, 0
        %v1051 = vsel %vm1014, 1, 0
        %v1052 = vsel %vm1015, 1, 0
        %vm1053 = vcmp.eq.s32.totalorder %v1041, 1
        %vm1054 = vcmp.eq.s32.totalorder %v1042, 1
        %vm1055 = vcmp.eq.s32.totalorder %v1043, 1
        %vm1056 = vcmp.eq.s32.totalorder %v1044, 1
        %vm1057 = vcmp.eq.s32.totalorder %v1045, 1
        %vm1058 = vcmp.eq.s32.totalorder %v1046, 1
        %vm1059 = vcmp.eq.s32.totalorder %v1047, 1
        %vm1060 = vcmp.eq.s32.totalorder %v1048, 1
        %vm1061 = vcmp.eq.s32.totalorder %v1049, 1
        %vm1062 = vcmp.eq.s32.totalorder %v1050, 1
        %vm1063 = vcmp.eq.s32.totalorder %v1051, 1
        %vm1064 = vcmp.eq.s32.totalorder %v1052, 1
        %v1065 = vsel %vm1053, %v1039, 0.0
        %v1066 = vsel %vm1054, %v1038, 0.0
        %v1067 = vsel %vm1055, %v1037, 0.0
        %v1068 = vsel %vm1056, %v1036, 0.0
        %v1069 = vsel %vm1057, %v1035, 0.0
        %v1070 = vsel %vm1058, %v1034, 0.0
        %v1071 = vsel %vm1059, %v1033, 0.0
        %v1072 = vsel %vm1060, %v1032, 0.0
        %v1073 = vsel %vm1061, %v1031, 0.0
        %v1074 = vsel %vm1062, %v1030, 0.0
        %v1075 = vsel %vm1063, %v1029, 0.0
        %v1076 = vsel %vm1064, %v1040, 0.0
        %v1077 = vpack.c.bf16 %v993, %v992
        %v1078 = vpack.c.bf16 %v995, %v994
        %v1079 = vpack.c.bf16 %v997, %v996
        %v1080 = vpack.c.bf16 %v999, %v998
        %v1081 = vpack.c.bf16 %v1001, %v1000
        %v1082 = vpack.c.bf16 %v1003, %v1002
        %v1083 = vpack.c.bf16 %v716, %v715
        %v1084 = vpack.c.bf16 %v654, %v653
        %v1085 = vpack.c.bf16 %v656, %v655
        %v1086 = vpack.c.bf16 %v658, %v657
        %v1087 = vpack.c.bf16 %v660, %v659
        %v1088 = vpack.c.bf16 %v773, %v772
        %v1089 = vpack.c.bf16 %v1066, %v1065
        %v1090 = vpack.c.bf16 %v1068, %v1067
        %v1091 = vpack.c.bf16 %v1070, %v1069
        %v1092 = vpack.c.bf16 %v1072, %v1071
        %v1093 = vpack.c.bf16 %v1074, %v1073
        %v1094 = vpack.c.bf16 %v1076, %v1075
        %1101 = vrot.lane.b32.xlu0 %v1083, 32
        %v1102 = vpop.permute.xlu0 %1101
        %1103 = vrot.lane.b32.xlu0 %v1084, 32
        %v1104 = vpop.permute.xlu0 %1103
        %1105 = vrot.lane.b32.xlu0 %v1085, 32
        %v1106 = vpop.permute.xlu0 %1105
        %1107 = vrot.lane.b32.xlu0 %v1086, 32
        %v1108 = vpop.permute.xlu0 %1107
        %1109 = vrot.lane.b32.xlu0 %v1087, 32
        %v1110 = vpop.permute.xlu0 %1109
        %1111 = vrot.lane.b32.xlu0 %v1088, 32
        %v1112 = vpop.permute.xlu0 %1111
        %1119 = vrot.lane.b32.xlu0 %v1089, 64
        %v1120 = vpop.permute.xlu0 %1119
        %1121 = vrot.lane.b32.xlu0 %v1090, 64
        %v1122 = vpop.permute.xlu0 %1121
        %1123 = vrot.lane.b32.xlu0 %v1091, 64
        %v1124 = vpop.permute.xlu0 %1123
        %1125 = vrot.lane.b32.xlu0 %v1092, 64
        %v1126 = vpop.permute.xlu0 %1125
        %1127 = vrot.lane.b32.xlu0 %v1093, 64
        %v1128 = vpop.permute.xlu0 %1127
        %1129 = vrot.lane.b32.xlu0 %v1094, 64
        %v1130 = vpop.permute.xlu0 %1129
        %vm1131 = vcmask 261120
        %v1134 = vsel %vm1131, %v1077, %v1102
        %v1137 = vsel %vm1131, %v1078, %v1104
        %v1140 = vsel %vm1131, %v1079, %v1106
        %v1143 = vsel %vm1131, %v1080, %v1108
        %v1146 = vsel %vm1131, %v1081, %v1110
        %v1149 = vsel %vm1131, %v1082, %v1112
        %vm1150 = vcmask 523264
        %v1152 = vsel %vm1150, %v1134, %v1120
        %v1154 = vsel %vm1150, %v1137, %v1122
        %v1156 = vsel %vm1150, %v1140, %v1124
        %v1158 = vsel %vm1150, %v1143, %v1126
        %v1160 = vsel %vm1150, %v1146, %v1128
        %v1162 = vsel %vm1150, %v1149, %v1130
        %v1163 = vld [vmem:[%s4] sm:$0xf]
        %v1164 = vld [vmem:[%s4 + $0x4] sm:$0xf]
        %v1165 = vld [vmem:[%s4 + $0x8] sm:$0xf]
        %v1166 = vld [vmem:[%s4 + $0xc] sm:$0xf]
        %v1167 = vld [vmem:[%s4 + $0x10] sm:$0xf]
        %v1168 = vld [vmem:[%s4 + $0x14] sm:$0xf]
        %v1169 = vld [vmem:[%s4 + $0x18] sm:$0xf]
        %v1170 = vld [vmem:[%s4 + $0x1c] sm:$0xf]
        %v1171 = vld [vmem:[%s4 + $0x20] sm:$0xf]
        %v1172 = vld [vmem:[%s4 + $0x24] sm:$0xf]
        %v1173 = vld [vmem:[%s4 + $0x28] sm:$0xf]
        %v1174 = vld [vmem:[%s4 + $0x2c] sm:$0xf]
        %v1175 = vld [vmem:[%s4 + $0x30] sm:$0xf]
        %v1176 = vld [vmem:[%s4 + $0x34] sm:$0xf]
        %v1177 = vld [vmem:[%s4 + $0x38] sm:$0xf]
        %v1178 = vld [vmem:[%s4 + $0x3c] sm:$0xf]
        %v1179 = vld [vmem:[%s4 + $0x40] sm:$0xf]
        %v1180 = vld [vmem:[%s4 + $0x44] sm:$0xf]
        %v1181 = vld [vmem:[%s4 + $0x48] sm:$0xf]
        %v1182 = vld [vmem:[%s4 + $0x4c] sm:$0xf]
        %v1183 = vld [vmem:[%s4 + $0x50] sm:$0xf]
        %v1184 = vld [vmem:[%s4 + $0x54] sm:$0xf]
        %v1185 = vld [vmem:[%s4 + $0x58] sm:$0xf]
        %v1186 = vld [vmem:[%s4 + $0x5c] sm:$0xf]
        %v1199 = vunpack.c.l.b16 %v1175
        %v1200 = vunpack.c.l.b16 %v1176
        %v1201 = vunpack.c.l.b16 %v1177
        %v1202 = vunpack.c.l.b16 %v1178
        %v1203 = vunpack.c.l.b16 %v1179
        %v1204 = vunpack.c.l.b16 %v1180
        %v1205 = vunpack.c.l.b16 %v1181
        %v1206 = vunpack.c.l.b16 %v1182
        %v1207 = vunpack.c.l.b16 %v1183
        %v1208 = vunpack.c.l.b16 %v1184
        %v1209 = vunpack.c.l.b16 %v1185
        %v1210 = vunpack.c.l.b16 %v1186
        %v1211 = vpack.c.b16 %v1200, %v1199
        %v1212 = vpack.c.b16 %v1202, %v1201
        %v1213 = vpack.c.b16 %v1204, %v1203
        %v1214 = vpack.c.b16 %v1206, %v1205
        %v1215 = vpack.c.b16 %v1208, %v1207
        %v1216 = vpack.c.b16 %v1210, %v1209
        %vm1223 = vcmask 785408
        %v1224 = vsel %vm1223, %v1154, 0
        %v1226 = vsel %vm1223, %v1156, 0
        %v1228 = vsel %vm1223, %v1158, 0
        %v1230 = vsel %vm1223, %v1160, 0
        %1232 = vmatprep.subr.bf16.mxu0 0
        %1233 = vmatpush1.bf16.msra.mxu0 %v1211
        %1234 = vmatprep.subr.bf16.mxu0 0
        %1235 = vmatpush1.bf16.msra.mxu0 %v1212
        %1236 = vmatprep.subr.bf16.mxu0 0
        %1237 = vmatpush1.bf16.msra.mxu0 %v1213
        %1238 = vmatprep.subr.bf16.mxu0 0
        %1239 = vmatpush1.bf16.msra.mxu0 %v1214
        %1240 = vmatprep.subr.bf16.mxu0 0
        %1241 = vmatpush1.bf16.msra.mxu0 %v1215
        %1242 = vmatprep.subr.bf16.mxu0 0
        %1243 = vmatpush1.bf16.msra.mxu0 %v1216
        %1244 = vmatprep.subr.bf16.mxu0 0
        %1245 = vmatpush1.bf16.msra.mxu0 0
        %1246 = vmatprep.subr.bf16.mxu0 0
        %1247 = vmatpush1.bf16.msra.mxu0 0
        %1248 = vmatprep.subr.bf16.mxu0 0
        %1249 = vmatpush1.bf16.msra.mxu0 0
        %1250 = vmatprep.subr.bf16.mxu0 0
        %1251 = vmatpush1.bf16.msra.mxu0 0
        %1252 = vmatprep.subr.bf16.mxu0 0
        %1253 = vmatpush1.bf16.msra.mxu0 0
        %1254 = vmatprep.subr.bf16.mxu0 0
        %1255 = vmatpush1.bf16.msra.mxu0 0
        %1256 = vmatprep.subr.bf16.mxu0 0
        %1257 = vmatpush1.bf16.msra.mxu0 0
        %1258 = vmatprep.subr.bf16.mxu0 0
        %1259 = vmatpush1.bf16.msra.mxu0 0
        %1260 = vmatprep.subr.bf16.mxu0 0
        %1261 = vmatpush1.bf16.msra.mxu0 0
        %1262 = vmatprep.subr.bf16.mxu0 0
        %1263 = vmatpush1.bf16.msra.mxu0 0
        %1264 = vmatprep.mubr.bf16.mxu0 0
        %1265 = vmatmul.mubr.bf16.gmra.mrb[0].mxu0 %v1224
        %v1266 = vpop.f32.mrb[0].mxu0
        %v1267 = vadd.f32 0.0, %v1266
        %v1268 = vpop.f32.mrb[0].mxu0
        %v1269 = vpop.f32.mrb[0].mxu0
        %v1270 = vadd.f32 0.0, %v1269
        %v1271 = vpop.f32.mrb[0].mxu0
        %1272 = vmatprep.mubr.bf16.mxu0 0
        %1273 = vmatmul.mubr.bf16.gmra.mrb[0].mxu0 %v1226
        %v1274 = vpop.f32.mrb[0].mxu0
        %v1275 = vadd.f32 0.0, %v1274
        %v1276 = vpop.f32.mrb[0].mxu0
        %v1277 = vpop.f32.mrb[0].mxu0
        %v1278 = vadd.f32 0.0, %v1277
        %v1279 = vpop.f32.mrb[0].mxu0
        %1280 = vmatprep.mubr.bf16.mxu0 0
        %1281 = vmatmul.mubr.bf16.gmra.mrb[0].mxu0 %v1228
        %v1282 = vpop.f32.mrb[0].mxu0
        %v1283 = vadd.f32 0.0, %v1282
        %v1284 = vpop.f32.mrb[0].mxu0
        %v1285 = vpop.f32.mrb[0].mxu0
        %v1286 = vadd.f32 0.0, %v1285
        %v1287 = vpop.f32.mrb[0].mxu0
        %1288 = vmatprep.mubr.bf16.mxu0 0
        %1289 = vmatmul.mubr.bf16.gmra.mrb[0].mxu0 %v1230
        %v1290 = vpop.f32.mrb[0].mxu0
        %v1291 = vadd.f32 0.0, %v1290
        %v1292 = vpop.f32.mrb[0].mxu0
        %v1293 = vpop.f32.mrb[0].mxu0
        %v1294 = vadd.f32 0.0, %v1293
        %v1295 = vpop.f32.mrb[0].mxu0
        %1296 = vdwg.mxu0
        %v1309 = vunpack.c.l.b16 %v1163
        %v1310 = vunpack.c.l.b16 %v1164
        %v1311 = vunpack.c.l.b16 %v1165
        %v1312 = vunpack.c.l.b16 %v1166
        %v1313 = vunpack.c.l.b16 %v1167
        %v1314 = vunpack.c.l.b16 %v1168
        %v1315 = vunpack.c.l.b16 %v1169
        %v1316 = vunpack.c.l.b16 %v1170
        %v1317 = vunpack.c.l.b16 %v1171
        %v1318 = vunpack.c.l.b16 %v1172
        %v1319 = vunpack.c.l.b16 %v1173
        %v1320 = vunpack.c.l.b16 %v1174
        %v1321 = vpack.c.b16 %v1310, %v1309
        %v1322 = vpack.c.b16 %v1312, %v1311
        %v1323 = vpack.c.b16 %v1314, %v1313
        %v1324 = vpack.c.b16 %v1316, %v1315
        %v1325 = vpack.c.b16 %v1318, %v1317
        %v1326 = vpack.c.b16 %v1320, %v1319
        %v1333 = vsel %vm1223, %v1152, 0
        %1335 = vmatprep.subr.bf16.mxu0 0
        %1336 = vmatpush1.bf16.msra.mxu0 %v1321
        %1337 = vmatprep.subr.bf16.mxu0 0
        %1338 = vmatpush1.bf16.msra.mxu0 %v1322
        %1339 = vmatprep.subr.bf16.mxu0 0
        %1340 = vmatpush1.bf16.msra.mxu0 %v1323
        %1341 = vmatprep.subr.bf16.mxu0 0
        %1342 = vmatpush1.bf16.msra.mxu0 %v1324
        %1343 = vmatprep.subr.bf16.mxu0 0
        %1344 = vmatpush1.bf16.msra.mxu0 %v1325
        %1345 = vmatprep.subr.bf16.mxu0 0
        %1346 = vmatpush1.bf16.msra.mxu0 %v1326
        %1347 = vmatprep.subr.bf16.mxu0 0
        %1348 = vmatpush1.bf16.msra.mxu0 0
        %1349 = vmatprep.subr.bf16.mxu0 0
        %1350 = vmatpush1.bf16.msra.mxu0 0
        %1351 = vmatprep.subr.bf16.mxu0 0
        %1352 = vmatpush1.bf16.msra.mxu0 0
        %1353 = vmatprep.subr.bf16.mxu0 0
        %1354 = vmatpush1.bf16.msra.mxu0 0
        %1355 = vmatprep.subr.bf16.mxu0 0
        %1356 = vmatpush1.bf16.msra.mxu0 0
        %1357 = vmatprep.subr.bf16.mxu0 0
        %1358 = vmatpush1.bf16.msra.mxu0 0
        %1359 = vmatprep.subr.bf16.mxu0 0
        %1360 = vmatpush1.bf16.msra.mxu0 0
        %1361 = vmatprep.subr.bf16.mxu0 0
        %1362 = vmatpush1.bf16.msra.mxu0 0
        %1363 = vmatprep.subr.bf16.mxu0 0
        %1364 = vmatpush1.bf16.msra.mxu0 0
        %1365 = vmatprep.subr.bf16.mxu0 0
        %1366 = vmatpush1.bf16.msra.mxu0 0
        %1367 = vmatprep.mubr.bf16.mxu0 0
        %1368 = vmatmul.mubr.bf16.gmra.mrb[0].mxu0 %v1333
        %v1369 = vpop.f32.mrb[0].mxu0
        %v1370 = vadd.f32 %v1267, %v1369
        %v1371 = vpop.f32.mrb[0].mxu0
        %v1372 = vpop.f32.mrb[0].mxu0
        %v1373 = vadd.f32 %v1270, %v1372
        %v1374 = vpop.f32.mrb[0].mxu0
        %1375 = vmatprep.mubr.bf16.mxu0 0
        %1376 = vmatmul.mubr.bf16.gmra.mrb[0].mxu0 %v1224
        %v1377 = vpop.f32.mrb[0].mxu0
        %v1378 = vadd.f32 %v1275, %v1377
        %v1379 = vpop.f32.mrb[0].mxu0
        %v1380 = vpop.f32.mrb[0].mxu0
        %v1381 = vadd.f32 %v1278, %v1380
        %v1382 = vpop.f32.mrb[0].mxu0
        %1383 = vmatprep.mubr.bf16.mxu0 0
        %1384 = vmatmul.mubr.bf16.gmra.mrb[0].mxu0 %v1226
        %v1385 = vpop.f32.mrb[0].mxu0
        %v1386 = vadd.f32 %v1283, %v1385
        %v1387 = vpop.f32.mrb[0].mxu0
        %v1388 = vpop.f32.mrb[0].mxu0
        %v1389 = vadd.f32 %v1286, %v1388
        %v1390 = vpop.f32.mrb[0].mxu0
        %1391 = vmatprep.mubr.bf16.mxu0 0
        %1392 = vmatmul.mubr.bf16.gmra.mrb[0].mxu0 %v1228
        %v1393 = vpop.f32.mrb[0].mxu0
        %v1394 = vadd.f32 %v1291, %v1393
        %v1395 = vpop.f32.mrb[0].mxu0
        %v1396 = vpop.f32.mrb[0].mxu0
        %v1397 = vadd.f32 %v1294, %v1396
        %v1398 = vpop.f32.mrb[0].mxu0
        %1399 = vdwg.mxu0
        %v1400 = vld [vmem:[%s4 + $0x60] sm:$0xf]
        %v1401 = vld [vmem:[%s4 + $0x64] sm:$0xf]
        %v1402 = vld [vmem:[%s4 + $0x68] sm:$0xf]
        %v1403 = vld [vmem:[%s4 + $0x6c] sm:$0xf]
        %v1404 = vld [vmem:[%s4 + $0x70] sm:$0xf]
        %v1405 = vld [vmem:[%s4 + $0x74] sm:$0xf]
        %v1406 = vld [vmem:[%s4 + $0x78] sm:$0xf]
        %v1407 = vld [vmem:[%s4 + $0x7c] sm:$0xf]
        %v1408 = vld [vmem:[%s4 + $0x80] sm:$0xf]
        %v1409 = vld [vmem:[%s4 + $0x84] sm:$0xf]
        %v1410 = vld [vmem:[%s4 + $0x88] sm:$0xf]
        %v1411 = vld [vmem:[%s4 + $0x8c] sm:$0xf]
        %v1424 = vunpack.c.l.b16 %v1400
        %v1425 = vunpack.c.l.b16 %v1401
        %v1426 = vunpack.c.l.b16 %v1402
        %v1427 = vunpack.c.l.b16 %v1403
        %v1428 = vunpack.c.l.b16 %v1404
        %v1429 = vunpack.c.l.b16 %v1405
        %v1430 = vunpack.c.l.b16 %v1406
        %v1431 = vunpack.c.l.b16 %v1407
        %v1432 = vunpack.c.l.b16 %v1408
        %v1433 = vunpack.c.l.b16 %v1409
        %v1434 = vunpack.c.l.b16 %v1410
        %v1435 = vunpack.c.l.b16 %v1411
        %v1436 = vpack.c.b16 %v1425, %v1424
        %v1437 = vpack.c.b16 %v1427, %v1426
        %v1438 = vpack.c.b16 %v1429, %v1428
        %v1439 = vpack.c.b16 %v1431, %v1430
        %v1440 = vpack.c.b16 %v1433, %v1432
        %v1441 = vpack.c.b16 %v1435, %v1434
        %v1448 = vsel %vm1223, %v1162, 0
        %1450 = vmatprep.subr.bf16.mxu0 0
        %1451 = vmatpush1.bf16.msra.mxu0 %v1436
        %1452 = vmatprep.subr.bf16.mxu0 0
        %1453 = vmatpush1.bf16.msra.mxu0 %v1437
        %1454 = vmatprep.subr.bf16.mxu0 0
        %1455 = vmatpush1.bf16.msra.mxu0 %v1438
        %1456 = vmatprep.subr.bf16.mxu0 0
        %1457 = vmatpush1.bf16.msra.mxu0 %v1439
        %1458 = vmatprep.subr.bf16.mxu0 0
        %1459 = vmatpush1.bf16.msra.mxu0 %v1440
        %1460 = vmatprep.subr.bf16.mxu0 0
        %1461 = vmatpush1.bf16.msra.mxu0 %v1441
        %1462 = vmatprep.subr.bf16.mxu0 0
        %1463 = vmatpush1.bf16.msra.mxu0 0
        %1464 = vmatprep.subr.bf16.mxu0 0
        %1465 = vmatpush1.bf16.msra.mxu0 0
        %1466 = vmatprep.subr.bf16.mxu0 0
        %1467 = vmatpush1.bf16.msra.mxu0 0
        %1468 = vmatprep.subr.bf16.mxu0 0
        %1469 = vmatpush1.bf16.msra.mxu0 0
        %1470 = vmatprep.subr.bf16.mxu0 0
        %1471 = vmatpush1.bf16.msra.mxu0 0
        %1472 = vmatprep.subr.bf16.mxu0 0
        %1473 = vmatpush1.bf16.msra.mxu0 0
        %1474 = vmatprep.subr.bf16.mxu0 0
        %1475 = vmatpush1.bf16.msra.mxu0 0
        %1476 = vmatprep.subr.bf16.mxu0 0
        %1477 = vmatpush1.bf16.msra.mxu0 0
        %1478 = vmatprep.subr.bf16.mxu0 0
        %1479 = vmatpush1.bf16.msra.mxu0 0
        %1480 = vmatprep.subr.bf16.mxu0 0
        %1481 = vmatpush1.bf16.msra.mxu0 0
        %1482 = vmatprep.mubr.bf16.mxu0 0
        %1483 = vmatmul.mubr.bf16.gmra.mrb[0].mxu0 %v1226
        %v1484 = vpop.f32.mrb[0].mxu0
        %v1485 = vadd.f32 0.0, %v1484
        %v1486 = vpop.f32.mrb[0].mxu0
        %v1487 = vpop.f32.mrb[0].mxu0
        %v1488 = vadd.f32 0.0, %v1487
        %v1489 = vpop.f32.mrb[0].mxu0
        %1490 = vmatprep.mubr.bf16.mxu0 0
        %1491 = vmatmul.mubr.bf16.gmra.mrb[0].mxu0 %v1228
        %v1492 = vpop.f32.mrb[0].mxu0
        %v1493 = vadd.f32 0.0, %v1492
        %v1494 = vpop.f32.mrb[0].mxu0
        %v1495 = vpop.f32.mrb[0].mxu0
        %v1496 = vadd.f32 0.0, %v1495
        %v1497 = vpop.f32.mrb[0].mxu0
        %1498 = vmatprep.mubr.bf16.mxu0 0
        %1499 = vmatmul.mubr.bf16.gmra.mrb[0].mxu0 %v1230
        %v1500 = vpop.f32.mrb[0].mxu0
        %v1501 = vadd.f32 0.0, %v1500
        %v1502 = vpop.f32.mrb[0].mxu0
        %v1503 = vpop.f32.mrb[0].mxu0
        %v1504 = vadd.f32 0.0, %v1503
        %v1505 = vpop.f32.mrb[0].mxu0
        %1506 = vmatprep.mubr.bf16.mxu0 0
        %1507 = vmatmul.mubr.bf16.gmra.mrb[0].mxu0 %v1448
        %v1508 = vpop.f32.mrb[0].mxu0
        %v1509 = vadd.f32 0.0, %v1508
        %v1510 = vpop.f32.mrb[0].mxu0
        %v1511 = vpop.f32.mrb[0].mxu0
        %v1512 = vadd.f32 0.0, %v1511
        %v1513 = vpop.f32.mrb[0].mxu0
        %1514 = vdwg.mxu0
        %v1515 = vadd.f32 %v1370, %v1485
        %v1516 = vadd.f32 %v1373, %v1488
        %v1517 = vadd.f32 %v1378, %v1493
        %v1518 = vadd.f32 %v1381, %v1496
        %v1519 = vadd.f32 %v1386, %v1501
        %v1520 = vadd.f32 %v1389, %v1504
        %v1521 = vadd.f32 %v1394, %v1509
        %v1522 = vadd.f32 %v1397, %v1512
        %v1523 = vld [vmem:[%s7] sm:$0x1]
        %v1525 = vlaneseq
        %v1526 = vshrl.u32 %v1525, 7
        %v1527 = vsub.s32 0, %v1526
        %v1528 = vrot.slane %v1523, %v1527
        %v1530 = vadd.f32 %v1515, %v1528
        %v1531 = vadd.f32 %v1516, %v1528
        %v1532 = vadd.f32 %v1517, %v1528
        %v1533 = vadd.f32 %v1518, %v1528
        %v1534 = vadd.f32 %v1519, %v1528
        %v1535 = vadd.f32 %v1520, %v1528
        %v1536 = vadd.f32 %v1521, %v1528
        %v1537 = vadd.f32 %v1522, %v1528
        %v1538 = vmax.f32 %v1530, 0.0
        %v1539 = vmax.f32 %v1531, 0.0
        %v1540 = vmax.f32 %v1532, 0.0
        %v1541 = vmax.f32 %v1533, 0.0
        %v1542 = vmax.f32 %v1534, 0.0
        %v1543 = vmax.f32 %v1535, 0.0
        %v1544 = vmax.f32 %v1536, 0.0
        %v1545 = vmax.f32 %v1537, 0.0
        %v1546 = vpack.c.bf16 %v1539, %v1538
        %v1547 = vpack.c.bf16 %v1541, %v1540
        %v1548 = vpack.c.bf16 %v1543, %v1542
        %v1549 = vpack.c.bf16 %v1545, %v1544
        %v1550 = vld [vmem:[%s5] sm:$0xf]
        %v1551 = vld [vmem:[%s5 + $0x4] sm:$0xf]
        %v1552 = vld [vmem:[%s5 + $0x8] sm:$0xf]
        %v1553 = vld [vmem:[%s5 + $0xc] sm:$0xf]
        %v1554 = vld [vmem:[%s8] sm:$0x1]
        %v1556 = vlaneseq
        %v1557 = vshrl.u32 %v1556, 7
        %v1558 = vsub.s32 0, %v1557
        %v1559 = vrot.slane %v1554, %v1558
        %v1565 = vunpack.c.l.b16 %v1550
        %v1566 = vunpack.c.l.b16 %v1551
        %v1567 = vunpack.c.l.b16 %v1552
        %v1568 = vunpack.c.l.b16 %v1553
        %v1569 = vpack.c.b16 %v1566, %v1565
        %v1570 = vpack.c.b16 %v1568, %v1567
        %v1574 = vsel %vm1131, %v1546, 0
        %v1577 = vsel %vm1131, %v1547, 0
        %v1580 = vsel %vm1131, %v1548, 0
        %v1583 = vsel %vm1131, %v1549, 0
        %1585 = vmatprep.subr.bf16.mxu0 0
        %1586 = vmatpush1.bf16.msra.mxu0 %v1569
        %1587 = vmatprep.subr.bf16.mxu0 0
        %1588 = vmatpush1.bf16.msra.mxu0 %v1570
        %1589 = vmatprep.subr.bf16.mxu0 0
        %1590 = vmatpush1.bf16.msra.mxu0 0
        %1591 = vmatprep.subr.bf16.mxu0 0
        %1592 = vmatpush1.bf16.msra.mxu0 0
        %1593 = vmatprep.subr.bf16.mxu0 0
        %1594 = vmatpush1.bf16.msra.mxu0 0
        %1595 = vmatprep.subr.bf16.mxu0 0
        %1596 = vmatpush1.bf16.msra.mxu0 0
        %1597 = vmatprep.subr.bf16.mxu0 0
        %1598 = vmatpush1.bf16.msra.mxu0 0
        %1599 = vmatprep.subr.bf16.mxu0 0
        %1600 = vmatpush1.bf16.msra.mxu0 0
        %1601 = vmatprep.subr.bf16.mxu0 0
        %1602 = vmatpush1.bf16.msra.mxu0 0
        %1603 = vmatprep.subr.bf16.mxu0 0
        %1604 = vmatpush1.bf16.msra.mxu0 0
        %1605 = vmatprep.subr.bf16.mxu0 0
        %1606 = vmatpush1.bf16.msra.mxu0 0
        %1607 = vmatprep.subr.bf16.mxu0 0
        %1608 = vmatpush1.bf16.msra.mxu0 0
        %1609 = vmatprep.subr.bf16.mxu0 0
        %1610 = vmatpush1.bf16.msra.mxu0 0
        %1611 = vmatprep.subr.bf16.mxu0 0
        %1612 = vmatpush1.bf16.msra.mxu0 0
        %1613 = vmatprep.subr.bf16.mxu0 0
        %1614 = vmatpush1.bf16.msra.mxu0 0
        %1615 = vmatprep.subr.bf16.mxu0 0
        %1616 = vmatpush1.bf16.msra.mxu0 0
        %1617 = vmatprep.mubr.bf16.mxu0 0
        %1618 = vmatmul.mubr.bf16.gmra.mrb[0].mxu0 %v1574
        %v1619 = vpop.f32.mrb[0].mxu0
        %v1620 = vadd.f32 %v1559, %v1619
        %v1621 = vpop.f32.mrb[0].mxu0
        %v1622 = vpop.f32.mrb[0].mxu0
        %v1623 = vadd.f32 %v1559, %v1622
        %v1624 = vpop.f32.mrb[0].mxu0
        %1625 = vmatprep.mubr.bf16.mxu0 0
        %1626 = vmatmul.mubr.bf16.gmra.mrb[0].mxu0 %v1577
        %v1627 = vpop.f32.mrb[0].mxu0
        %v1628 = vadd.f32 %v1559, %v1627
        %v1629 = vpop.f32.mrb[0].mxu0
        %v1630 = vpop.f32.mrb[0].mxu0
        %v1631 = vadd.f32 %v1559, %v1630
        %v1632 = vpop.f32.mrb[0].mxu0
        %1633 = vmatprep.mubr.bf16.mxu0 0
        %1634 = vmatmul.mubr.bf16.gmra.mrb[0].mxu0 %v1580
        %v1635 = vpop.f32.mrb[0].mxu0
        %v1636 = vadd.f32 %v1559, %v1635
        %v1637 = vpop.f32.mrb[0].mxu0
        %v1638 = vpop.f32.mrb[0].mxu0
        %v1639 = vadd.f32 %v1559, %v1638
        %v1640 = vpop.f32.mrb[0].mxu0
        %1641 = vmatprep.mubr.bf16.mxu0 0
        %1642 = vmatmul.mubr.bf16.gmra.mrb[0].mxu0 %v1583
        %v1643 = vpop.f32.mrb[0].mxu0
        %v1644 = vadd.f32 %v1559, %v1643
        %v1645 = vpop.f32.mrb[0].mxu0
        %v1646 = vpop.f32.mrb[0].mxu0
        %v1647 = vadd.f32 %v1559, %v1646
        %v1648 = vpop.f32.mrb[0].mxu0
        %1649 = vdwg.mxu0
        %v1650 = vunpack.c.l.bf16 %v485
        %v1651 = vunpack.c.l.bf16 %v486
        %v1652 = vunpack.c.l.bf16 %v487
        %v1653 = vunpack.c.l.bf16 %v488
        %v1654 = vunpack.c.l.bf16 %v489
        %v1655 = vunpack.c.l.bf16 %v490
        %v1656 = vunpack.c.l.bf16 %v491
        %v1657 = vunpack.c.l.bf16 %v492
        %v1658 = vadd.f32 %v1620, %v1650
        %v1659 = vadd.f32 %v1623, %v1651
        %v1660 = vadd.f32 %v1628, %v1652
        %v1661 = vadd.f32 %v1631, %v1653
        %v1662 = vadd.f32 %v1636, %v1654
        %v1663 = vadd.f32 %v1639, %v1655
        %v1664 = vadd.f32 %v1644, %v1656
        %v1665 = vadd.f32 %v1647, %v1657
        %v1666 = vmax.f32 %v1658, 0.0
        %v1667 = vmax.f32 %v1659, 0.0
        %v1668 = vmax.f32 %v1660, 0.0
        %v1669 = vmax.f32 %v1661, 0.0
        %v1670 = vmax.f32 %v1662, 0.0
        %v1671 = vmax.f32 %v1663, 0.0
        %v1672 = vmax.f32 %v1664, 0.0
        %v1673 = vmax.f32 %v1665, 0.0
        %v1674 = vpack.c.bf16 %v1667, %v1666
        %v1675 = vpack.c.bf16 %v1669, %v1668
        %v1676 = vpack.c.bf16 %v1671, %v1670
        %v1677 = vpack.c.bf16 %v1673, %v1672
        %v1682 = vunpack.c.l.b16 %v1674
        %v1683 = vunpack.c.h.b16 %v1674
        %v1684 = vunpack.c.l.b16 %v1675
        %v1685 = vunpack.c.h.b16 %v1675
        %v1686 = vunpack.c.l.b16 %v1676
        %v1687 = vunpack.c.h.b16 %v1676
        %v1688 = vunpack.c.l.b16 %v1677
        %v1689 = vunpack.c.h.b16 %v1677
        %v1690 = vpack.c.b16 %v1682, %v1682
        %v1691 = vpack.c.b16 %v1683, %v1683
        %v1692 = vpack.c.b16 %v1684, %v1684
        %v1693 = vpack.c.b16 %v1685, %v1685
        %v1694 = vpack.c.b16 %v1686, %v1686
        %v1695 = vpack.c.b16 %v1687, %v1687
        %v1696 = vpack.c.b16 %v1688, %v1688
        %v1697 = vpack.c.b16 %v1689, %v1689
        %1706 = vst [vmem:[%s462] sm:$0xf] %v1690
        %1707 = vst [vmem:[%s462 + $0x4] sm:$0xf] %v1691
        %1708 = vst [vmem:[%s462 + $0x8] sm:$0xf] %v1692
        %1709 = vst [vmem:[%s462 + $0xc] sm:$0xf] %v1693
        %1710 = vst [vmem:[%s462 + $0x10] sm:$0xf] %v1694
        %1711 = vst [vmem:[%s462 + $0x14] sm:$0xf] %v1695
        %1712 = vst [vmem:[%s462 + $0x18] sm:$0xf] %v1696
        %1713 = vst [vmem:[%s462 + $0x1c] sm:$0xf] %v1697
        %s1714 = sand.u32 %s277, 1
        %s1715 = scalar_lea.sflag [#allocation4], %s1714
        %s1716 = sand.u32 %s277, 1
        %s1717 = smul.addr %s1716, 32
        %s1718 = scalar_lea.vmem [#allocation7], %s1717
        // Predicated region
        $region65: #{tpu_custom_call.1} parent=55 // pred_check
          %p1719 = pneg %p287
        $region66: #{tpu_custom_call.1} parent=55 // pred_check_branch
          %1721 = sbr.rel (%p1719) target = $region68
        $region67: #{tpu_custom_call.1} parent=55 // pred_region
          %s1722 = smul.u32 8, %s34
          %s1724 = ssub.s32 512, 512
          %1725 = vsyncadd %s1715, %s1724
          %s1726 = smul.addr %s33, 32
          %s1727 = sadd.s32 %s1722, %s1726
          %s1728 = smul.addr %s1727, 64
          %s1729 = scalar_lea.hbm %s9, %s1728
          %s1730 = sshll.u32 %s1718, 4
          %s1731 = int_to_ptr.vmem [resolvable:$true] %s1730
          %1736 = dma.vmem_to_hbm [thread:$0]  %s1731, 512, %s1729, %s1715, 64, 64, 4
        $region68: #{tpu_custom_call.1} parent=55 // pred_fallthru
          _
      $region56: #{tpu_custom_call.1} parent=5 // pred_fallthru
        _
      %p1737 = scmp.le.s32.totalorder 2, %s24
      // Predicated region
      $region69: #{tpu_custom_call.1} parent=5 // pred_check
        %p1738 = pneg %p1737
      $region70: #{tpu_custom_call.1} parent=5 // pred_check_branch
        %1740 = sbr.rel (%p1738) target = $region72
      $region71: #{tpu_custom_call.1} parent=5 // pred_region
        %s1741 = ssub.s32 %s24, 2
        // Predicated region
        $region73: #{tpu_custom_call.1} parent=71 // pred_check
          %p1742 = pneg %p293
        $region74: #{tpu_custom_call.1} parent=71 // pred_check_branch
          %1744 = sbr.rel (%p1742) target = $region76
        $region75: #{tpu_custom_call.1} parent=71 // pred_region
          %s1745 = sand.u32 %s278, 1
          %s1746 = scalar_lea.sflag [#allocation4], %s1745
          %s1747 = sand.u32 %s278, 1
          %s1748 = smul.addr %s1747, 32
          %s1749 = scalar_lea.vmem [#allocation7], %s1748
          %1750 = dma.done %s1746, 512
        $region76: #{tpu_custom_call.1} parent=71 // pred_fallthru
          _
      $region72: #{tpu_custom_call.1} parent=5 // pred_fallthru
        _
    $region6: #{tpu_custom_call.1} parent=1 // loop_footer
      %s28 = sadd.s32 1, %s24
    $region7: #{tpu_custom_call.1} parent=1 // loop_footer_branch
      %23 = sbr.rel target = $region3
    $region8: #{tpu_custom_call.1} parent=1 // loop_exit
      _
    %1751 = vsyncpa [#allocation3], 1
    %s1752 = scalar_lea.sflag [#allocation3], 1
    %1753 = vsyncpa %s1752, 1
    %1754 = vsyncpa [#allocation6], 1
    %s1755 = scalar_lea.sflag [#allocation6], 1
    %1756 = vsyncpa %s1755, 1
    %1757 = vsyncpa [#allocation4], 1
    %s1758 = scalar_lea.sflag [#allocation4], 1
    %1759 = vsyncpa %s1758, 1

</llo_original>
